<compile_context>
chip_gen: v6e
topology: v6e:2x2x1
jax: 0.10.0
libtpu: 0.0.40
codegen_flags: <defaults>
</compile_context>

<pallas_src>
import jax
import jax.numpy as jnp
from jax.experimental import pallas as pl
from jax.experimental.pallas import tpu as pltpu


def se_proj_bn_kernel(s_ref, w1t_ref, b1_ref, x_ref, w2_ref, gamma_ref,
                      beta_ref, out_ref):
    # --- SE gate as a ROW: [1,28] @ [28,672] + [1,672] -> sigmoid ----------
    pre = jnp.dot(s_ref[...], w1t_ref[...],
                  preferred_element_type=jnp.float32) + b1_ref[...]   # [1,672]
    gate = jax.nn.sigmoid(pre)                                        # [1,672]

    # --- fold gate into w2 (near-free sublane broadcast over 112 rows) -----
    w2g = w2_ref[...].astype(jnp.float32) * gate                      # [112,672]

    # --- projection: (w2 * gate) @ x == w2 @ (gate * x); x used as-is ------
    z = jnp.dot(w2g, x_ref[...],
                preferred_element_type=jnp.float32)                   # [112,196]

    # --- BatchNorm2d, training-mode batch stats over HW (N=1, biased var) --
    # shifted (two-pass) variance, XLU cross-lane reductions
    hw = z.shape[1]
    inv_hw = 1.0 / hw
    mean = jnp.sum(z, axis=1, keepdims=True) * inv_hw                  # [112,1]
    zc = z - mean
    var = jnp.sum(zc * zc, axis=1, keepdims=True) * inv_hw             # [112,1]
    inv_std = jax.lax.rsqrt(var + 1e-5)
    out_ref[...] = zc * (inv_std * gamma_ref[...]) + beta_ref[...]     # [112,196]


def prepack_params(w1, b1, w2, gamma, beta):
    """One-time repack of the PyTorch-shaped parameters.

    w1 [672,28,1,1] -> [28,672] bf16 (row-gate orientation)
    b1 [672]        -> [1,672]  f32
    w2 [112,672,1,1]-> [112,672] bf16
    gamma/beta [112]-> [112,1]  f32
    """
    c_in, c_se = w1.shape[0], w1.shape[1]
    c_out = w2.shape[0]
    w1t = jnp.transpose(w1.reshape(c_in, c_se)).astype(jnp.bfloat16)   # [28,672]
    b1r = b1.reshape(1, c_in)                                          # [1,672]
    w2m = w2.reshape(c_out, c_in).astype(jnp.bfloat16)                 # [112,672]
    return w1t, b1r, w2m, gamma.reshape(c_out, 1), beta.reshape(c_out, 1)


def se_proj_bn(x159, x156, w1t, b1r, w2m, gammac, betac):
    """x159: [1,28,1,1], x156: [1,672,14,14] -> [1,112,14,14]."""
    n, c_se, _, _ = x159.shape
    _, c_in, h, w = x156.shape
    c_out = w2m.shape[0]
    hw = h * w
    assert n == 1

    s_row = x159.reshape(1, c_se)        # free reshape
    x_cm = x156.reshape(c_in, hw)        # free reshape of NCHW -> (C, HW)

    vmem = pl.BlockSpec(memory_space=pltpu.MemorySpace.VMEM)
    cost = pl.CostEstimate(
        flops=(2 * hw * c_in * c_out      # projection matmul
               + 2 * c_in * c_se          # gate matmul
               + c_in * c_out             # w2 * gate
               + 6 * c_out * hw),         # BN tail
        transcendentals=c_in + c_out,
        bytes_accessed=(2 * (w1t.size + w2m.size)                      # bf16
                        + 4 * (s_row.size + b1r.size + x_cm.size
                               + gammac.size + betac.size + c_out * hw)))

    out_cm = pl.pallas_call(
        se_proj_bn_kernel,
        out_shape=jax.ShapeDtypeStruct((c_out, hw), jnp.float32),
        in_specs=[vmem] * 7,
        out_specs=vmem,
        cost_estimate=cost,
    )(s_row, w1t, b1r, x_cm, w2m, gammac, betac)

    # (Cout, HW) is already NCHW-contiguous for N=1 -> free reshape
    return out_cm.reshape(1, c_out, h, w)


@jax.jit
def forward(x159, x156, w1, b1, w2, gamma, beta):
    w1t, b1r, w2m, gc, bc = prepack_params(w1, b1, w2, gamma, beta)
    return se_proj_bn(x159, x156, w1t, b1r, w2m, gc, bc)


def reference(x159, x156, w1, b1, w2, gamma, beta):
    """Pure-JAX reference of the PyTorch forward (training-mode BN)."""
    gate = jax.nn.sigmoid(
        jnp.einsum('oc,nchw->nohw', w1[:, :, 0, 0], x159, precision='highest')
        + b1[None, :, None, None])
    y = gate * x156
    z = jnp.einsum('oc,nchw->nohw', w2[:, :, 0, 0], y, precision='highest')
    mean = z.mean(axis=(0, 2, 3), keepdims=True)
    var = ((z - mean) ** 2).mean(axis=(0, 2, 3), keepdims=True)
    return ((z - mean) * jax.lax.rsqrt(var + 1e-5)
            * gamma[None, :, None, None] + beta[None, :, None, None])


if __name__ == "__main__":
    key = jax.random.PRNGKey(0)
    k = jax.random.split(key, 7)

    C_SE, C_IN, C_OUT, H, W = 28, 672, 112, 14, 14

    # inputs (shapes fixed by the module's conv layers)
    x156 = jax.random.normal(k[0], (1, C_IN, H, W), dtype=jnp.float32)
    x159 = jax.random.normal(k[1], (1, C_SE, 1, 1), dtype=jnp.float32)

    # deterministic parameter init (PyTorch layer shapes)
    w1 = jax.random.normal(k[2], (C_IN, C_SE, 1, 1), dtype=jnp.float32) * 0.05
    b1 = jax.random.normal(k[3], (C_IN,), dtype=jnp.float32) * 0.05
    w2 = jax.random.normal(k[4], (C_OUT, C_IN, 1, 1), dtype=jnp.float32) * 0.05
    gamma = jnp.ones((C_OUT,), dtype=jnp.float32) + 0.1 * jax.random.normal(
        k[5], (C_OUT,), dtype=jnp.float32)
    beta = 0.1 * jax.random.normal(k[6], (C_OUT,), dtype=jnp.float32)

    out = forward(x159, x156, w1, b1, w2, gamma, beta)
    jax.block_until_ready(out)
    assert out.shape == (1, C_OUT, H, W), out.shape

    ref = reference(x159, x156, w1, b1, w2, gamma, beta)
    max_err = float(jnp.max(jnp.abs(out - ref)))
    # loose tolerance: bf16 weights + default-precision MXU vs 'highest' ref
    assert max_err < 5e-2, f"max abs err {max_err}"

    print("KERNEL_OK")
</pallas_src>

<mosaic_0001>
module attributes {stable_mosaic.version = 11 : i64} {
  func.func @se_proj_bn_kernel(%arg0: memref<1x28xf32, #tpu.memory_space<vmem>>, %arg1: memref<28x672xbf16, #tpu.memory_space<vmem>>, %arg2: memref<1x672xf32, #tpu.memory_space<vmem>>, %arg3: memref<672x196xf32, #tpu.memory_space<vmem>>, %arg4: memref<112x672xbf16, #tpu.memory_space<vmem>>, %arg5: memref<112x1xf32, #tpu.memory_space<vmem>>, %arg6: memref<112x1xf32, #tpu.memory_space<vmem>>, %arg7: memref<112x196xf32, #tpu.memory_space<vmem>>) attributes {dimension_semantics = [], scalar_prefetch = 0 : i64, scratch_operands = 0 : i64, tpu.core_type = #tpu.core_type<tc>} {
    %c0 = arith.constant 0 : index
    %c0_0 = arith.constant 0 : index
    %0 = vector.load %arg0[%c0, %c0_0] : memref<1x28xf32, #tpu.memory_space<vmem>>, vector<1x28xf32>
    %c0_1 = arith.constant 0 : index
    %c0_2 = arith.constant 0 : index
    %1 = vector.load %arg1[%c0_1, %c0_2] : memref<28x672xbf16, #tpu.memory_space<vmem>>, vector<28x672xbf16>
    %cst = arith.constant dense<0.000000e+00> : vector<1x672xf32>
    %2 = tpu.matmul %0, %1, %cst {dimension_numbers = #tpu.dot_dimension_numbers<[1], [0], [0], [1], [0, 0, 1, 1], [], []>} : vector<1x28xf32>, vector<28x672xbf16>, vector<1x672xf32> -> vector<1x672xf32>
    %c0_3 = arith.constant 0 : index
    %c0_4 = arith.constant 0 : index
    %3 = vector.load %arg2[%c0_3, %c0_4] : memref<1x672xf32, #tpu.memory_space<vmem>>, vector<1x672xf32>
    %4 = arith.addf %2, %3 : vector<1x672xf32>
    %5 = arith.negf %4 : vector<1x672xf32>
    %6 = math.exp %5 : vector<1x672xf32>
    %cst_5 = arith.constant 1.000000e+00 : f32
    %7 = vector.broadcast %cst_5 : f32 to vector<1x672xf32>
    %8 = arith.addf %7, %6 : vector<1x672xf32>
    %9 = arith.divf %7, %8 : vector<1x672xf32>
    %c0_6 = arith.constant 0 : index
    %c0_7 = arith.constant 0 : index
    %10 = vector.load %arg4[%c0_6, %c0_7] : memref<112x672xbf16, #tpu.memory_space<vmem>>, vector<112x672xbf16>
    %11 = arith.extf %10 : vector<112x672xbf16> to vector<112x672xf32>
    %12 = vector.broadcast %9 : vector<1x672xf32> to vector<112x672xf32>
    %13 = arith.mulf %11, %12 : vector<112x672xf32>
    %c0_8 = arith.constant 0 : index
    %c0_9 = arith.constant 0 : index
    %14 = vector.load %arg3[%c0_8, %c0_9] : memref<672x196xf32, #tpu.memory_space<vmem>>, vector<672x196xf32>
    %cst_10 = arith.constant dense<0.000000e+00> : vector<112x196xf32>
    %15 = tpu.matmul %13, %14, %cst_10 {dimension_numbers = #tpu.dot_dimension_numbers<[1], [0], [0], [1], [0, 0, 1, 1], [], []>} : vector<112x672xf32>, vector<672x196xf32>, vector<112x196xf32> -> vector<112x196xf32>
    %cst_11 = arith.constant dense<0.000000e+00> : vector<112xf32>
    %16 = vector.multi_reduction <add>, %15, %cst_11 [1] : vector<112x196xf32> to vector<112xf32>
    %17 = vector.shape_cast %16 : vector<112xf32> to vector<112x1xf32>
    %cst_12 = arith.constant 0.00510204071 : f32
    %18 = vector.broadcast %cst_12 : f32 to vector<112x1xf32>
    %19 = arith.mulf %17, %18 : vector<112x1xf32>
    %20 = vector.broadcast %19 : vector<112x1xf32> to vector<112x196xf32>
    %21 = arith.subf %15, %20 : vector<112x196xf32>
    %22 = arith.mulf %21, %21 : vector<112x196xf32>
    %cst_13 = arith.constant dense<0.000000e+00> : vector<112xf32>
    %23 = vector.multi_reduction <add>, %22, %cst_13 [1] : vector<112x196xf32> to vector<112xf32>
    %24 = vector.shape_cast %23 : vector<112xf32> to vector<112x1xf32>
    %cst_14 = arith.constant 0.00510204071 : f32
    %25 = vector.broadcast %cst_14 : f32 to vector<112x1xf32>
    %26 = arith.mulf %24, %25 : vector<112x1xf32>
    %cst_15 = arith.constant 9.99999974E-6 : f32
    %27 = vector.broadcast %cst_15 : f32 to vector<112x1xf32>
    %28 = arith.addf %26, %27 : vector<112x1xf32>
    %29 = math.rsqrt %28 : vector<112x1xf32>
    %c0_16 = arith.constant 0 : index
    %c0_17 = arith.constant 0 : index
    %30 = vector.load %arg5[%c0_16, %c0_17] : memref<112x1xf32, #tpu.memory_space<vmem>>, vector<112x1xf32>
    %31 = arith.mulf %29, %30 : vector<112x1xf32>
    %32 = vector.broadcast %31 : vector<112x1xf32> to vector<112x196xf32>
    %33 = arith.mulf %21, %32 : vector<112x196xf32>
    %c0_18 = arith.constant 0 : index
    %c0_19 = arith.constant 0 : index
    %34 = vector.load %arg6[%c0_18, %c0_19] : memref<112x1xf32, #tpu.memory_space<vmem>>, vector<112x1xf32>
    %35 = vector.broadcast %34 : vector<112x1xf32> to vector<112x196xf32>
    %36 = arith.addf %33, %35 : vector<112x196xf32>
    %c0_20 = arith.constant 0 : index
    %c0_21 = arith.constant 0 : index
    %37 = vector.load %arg7[%c0_20, %c0_21] : memref<112x196xf32, #tpu.memory_space<vmem>>, vector<112x196xf32>
    tpu.vector_store %arg7[%c0_20, %c0_21], %36 {strides = array<i32>} : memref<112x196xf32, #tpu.memory_space<vmem>>, vector<112x196xf32>,
    return
  }
}

</mosaic_0001>

<llo_original>
// kernel: forward.1
$region0: #{forward.1}
  #allocation0 [shape = 'u32[]', space=smem, size = 0x4, offset = 0x4, fixed_abs, tag = 'smem constant byte address 0x4 - core index']
  #allocation1 [shape = 'u32[144,128]{1,0:T(1,128)}', space=vmem, size = 0x12000, scoped, tag = 'internal scratch']
  %s0 = inlined_call_operand.vmem [shape: f32[1,28], index: 0, kind: input, shape index: {}]
  %s1 = inlined_call_operand.vmem [shape: bf16[28,672], index: 1, kind: input, shape index: {}]
  %s2 = inlined_call_operand.vmem [shape: f32[1,672], index: 2, kind: input, shape index: {}]
  %s3 = inlined_call_operand.vmem [shape: f32[672,196], index: 3, kind: input, shape index: {}]
  %s4 = inlined_call_operand.vmem [shape: bf16[112,672], index: 4, kind: input, shape index: {}]
  %s5 = inlined_call_operand.vmem [shape: f32[112,1], index: 5, kind: input, shape index: {}]
  %s6 = inlined_call_operand.vmem [shape: f32[112,1], index: 6, kind: input, shape index: {}]
  %s7 = inlined_call_operand.vmem [shape: f32[112,196], index: 7, kind: output, shape index: {}]
  %s8 = sld [smem:[#allocation0]]
  $region38: #{forward.1} parent=0
    _
  %s10 = ssub.s32 1, %s8
  %s11 = scalar_select 0, %s10, %s8
  // Predicated region
  $region2: #{forward.1} parent=0 // pred_check
    _
  $region3: #{forward.1} parent=0 // pred_check_branch
    %13 = sbr.rel (0) target = $region5
  $region4: #{forward.1} parent=0 // pred_region
    _
  $region5: #{forward.1} parent=0 // pred_fallthru
    _
  // Predicated region
  $region6: #{forward.1} parent=0 // pred_check
    _
  $region7: #{forward.1} parent=0 // pred_check_branch
    %15 = sbr.rel (0) target = $region9
  $region8: #{forward.1} parent=0 // pred_region
    _
  $region9: #{forward.1} parent=0 // pred_fallthru
    _
  // Predicated region
  $region10: #{forward.1} parent=0 // pred_check
    _
  $region11: #{forward.1} parent=0 // pred_check_branch
    %17 = sbr.rel (0) target = $region13
  $region12: #{forward.1} parent=0 // pred_region
    _
  $region13: #{forward.1} parent=0 // pred_fallthru
    _
  // Predicated region
  $region14: #{forward.1} parent=0 // pred_check
    _
  $region15: #{forward.1} parent=0 // pred_check_branch
    %19 = sbr.rel (0) target = $region17
  $region16: #{forward.1} parent=0 // pred_region
    _
  $region17: #{forward.1} parent=0 // pred_fallthru
    _
  // Predicated region
  $region18: #{forward.1} parent=0 // pred_check
    _
  $region19: #{forward.1} parent=0 // pred_check_branch
    %21 = sbr.rel (0) target = $region21
  $region20: #{forward.1} parent=0 // pred_region
    _
  $region21: #{forward.1} parent=0 // pred_fallthru
    _
  // Predicated region
  $region22: #{forward.1} parent=0 // pred_check
    _
  $region23: #{forward.1} parent=0 // pred_check_branch
    %23 = sbr.rel (0) target = $region25
  $region24: #{forward.1} parent=0 // pred_region
    _
  $region25: #{forward.1} parent=0 // pred_fallthru
    _
  // Predicated region
  $region26: #{forward.1} parent=0 // pred_check
    _
  $region27: #{forward.1} parent=0 // pred_check_branch
    %25 = sbr.rel (0) target = $region29
  $region28: #{forward.1} parent=0 // pred_region
    _
  $region29: #{forward.1} parent=0 // pred_fallthru
    _
  %v27 = vld [vmem:[%s0] sm:$0x1]
  %v28 = vld [vmem:[%s1] sm:$0xff]
  %v29 = vld [vmem:[%s1 + $0x8] sm:$0xff]
  %v30 = vld [vmem:[%s1 + $0x10] sm:$0xff]
  %v31 = vld [vmem:[%s1 + $0x18] sm:$0xff]
  %v32 = vld [vmem:[%s1 + $0x20] sm:$0xff]
  %v33 = vld [vmem:[%s1 + $0x28] sm:$0xff]
  %v34 = vld [vmem:[%s1 + $0x30] sm:$0xff]
  %v35 = vld [vmem:[%s1 + $0x38] sm:$0xff]
  %v36 = vld [vmem:[%s1 + $0x40] sm:$0xff]
  %v37 = vld [vmem:[%s1 + $0x48] sm:$0x33]
  %v38 = vld [vmem:[%s1 + $0x50] sm:$0x33]
  %v39 = vld [vmem:[%s1 + $0x58] sm:$0x33]
  %v40 = vld [vmem:[%s2] sm:$0x3f]
  %v53 = vunpack.c.l.b16 %v28
  %v54 = vunpack.c.h.b16 %v28
  %v55 = vunpack.c.l.b16 %v29
  %v56 = vunpack.c.h.b16 %v29
  %v57 = vunpack.c.l.b16 %v30
  %v58 = vunpack.c.h.b16 %v30
  %v59 = vunpack.c.l.b16 %v31
  %v60 = vunpack.c.h.b16 %v31
  %v61 = vunpack.c.l.b16 %v32
  %v62 = vunpack.c.h.b16 %v32
  %v63 = vunpack.c.l.b16 %v33
  %v64 = vunpack.c.h.b16 %v33
  %v65 = vunpack.c.l.b16 %v34
  %v66 = vunpack.c.h.b16 %v34
  %v67 = vunpack.c.l.b16 %v35
  %v68 = vunpack.c.h.b16 %v35
  %v69 = vunpack.c.l.b16 %v36
  %v70 = vunpack.c.h.b16 %v36
  %v71 = vunpack.c.l.b16 %v37
  %v72 = vunpack.c.h.b16 %v37
  %v73 = vunpack.c.l.b16 %v38
  %v74 = vunpack.c.h.b16 %v38
  %v75 = vunpack.c.l.b16 %v39
  %v76 = vunpack.c.h.b16 %v39
  %v77 = vpack.c.b16 %v59, %v53
  %v78 = vpack.c.b16 %v60, %v54
  %v79 = vpack.c.b16 %v61, %v55
  %v80 = vpack.c.b16 %v62, %v56
  %v81 = vpack.c.b16 %v63, %v57
  %v82 = vpack.c.b16 %v64, %v58
  %v83 = vpack.c.b16 %v71, %v65
  %v84 = vpack.c.b16 %v72, %v66
  %v85 = vpack.c.b16 %v73, %v67
  %v86 = vpack.c.b16 %v74, %v68
  %v87 = vpack.c.b16 %v75, %v69
  %v88 = vpack.c.b16 %v76, %v70
  %v96 = vlaneseq
  %v97 = vshrl.u32 %v96, 7
  %v98 = vsub.s32 0, %v97
  %v99 = vrot.slane %v40, %v98
  %v100 = vlaneseq
  %v101 = vshrl.u32 %v100, 7
  %v102 = vsub.s32 1, %v101
  %v103 = vrot.slane %v40, %v102
  %v104 = vlaneseq
  %v105 = vshrl.u32 %v104, 7
  %v106 = vsub.s32 2, %v105
  %v107 = vrot.slane %v40, %v106
  %v108 = vlaneseq
  %v109 = vshrl.u32 %v108, 7
  %v110 = vsub.s32 3, %v109
  %v111 = vrot.slane %v40, %v110
  %v112 = vlaneseq
  %v113 = vshrl.u32 %v112, 7
  %v114 = vsub.s32 4, %v113
  %v115 = vrot.slane %v40, %v114
  %v116 = vlaneseq
  %v117 = vshrl.u32 %v116, 7
  %v118 = vsub.s32 5, %v117
  %v119 = vrot.slane %v40, %v118
  %vm126 = vcmask 228352
  %v128 = vsel %vm126, %v27, 0
  %vm130 = vcmask 1045504
  %v132 = vsel %vm130, %v83, 0
  %v135 = vsel %vm130, %v84, 0
  %v138 = vsel %vm130, %v85, 0
  %v141 = vsel %vm130, %v86, 0
  %v144 = vsel %vm130, %v87, 0
  %v147 = vsel %vm130, %v88, 0
  %149 = vmatprep.subr.bf16.mxu0 0
  %150 = vmatpush1.bf16.msra.mxu0 0
  %151 = vmatprep.subr.bf16.mxu0 0
  %152 = vmatpush1.bf16.msra.mxu0 0
  %153 = vmatprep.subr.bf16.mxu0 0
  %154 = vmatpush1.bf16.msra.mxu0 0
  %155 = vmatprep.subr.bf16.mxu0 0
  %156 = vmatpush1.bf16.msra.mxu0 0
  %157 = vmatprep.subr.bf16.mxu0 0
  %158 = vmatpush1.bf16.msra.mxu0 0
  %159 = vmatprep.subr.bf16.mxu0 0
  %160 = vmatpush1.bf16.msra.mxu0 0
  %161 = vmatprep.subr.bf16.mxu0 %v135
  %162 = vmatpush1.bf16.msra.mxu0 %v132
  %163 = vmatprep.subr.bf16.mxu0 %v78
  %164 = vmatpush1.bf16.msra.mxu0 %v77
  %165 = vmatprep.subr.bf16.mxu0 0
  %166 = vmatpush2.bf16.msra.mxu0 0
  %167 = vmatprep.subr.bf16.mxu0 0
  %168 = vmatpush2.bf16.msra.mxu0 0
  %169 = vmatprep.subr.bf16.mxu0 0
  %170 = vmatpush2.bf16.msra.mxu0 0
  %171 = vmatprep.subr.bf16.mxu0 0
  %172 = vmatpush2.bf16.msra.mxu0 0
  %173 = vmatprep.subr.bf16.mxu0 0
  %174 = vmatpush2.bf16.msra.mxu0 0
  %175 = vmatprep.subr.bf16.mxu0 0
  %176 = vmatpush2.bf16.msra.mxu0 0
  %177 = vmatprep.subr.bf16.mxu0 0
  %178 = vmatpush2.bf16.msra.mxu0 0
  %179 = vmatprep.subr.bf16.mxu0 0
  %180 = vmatpush2.bf16.msra.mxu0 0
  %181 = vmatprep.mubr.f32.mxu0 0.0
  %182 = vmatmul.mubr.f32.gmra.mxu0 %v128
  %v183 = vpop.f32.mrf.mxu0
  %v184 = vadd.f32 %v99, %v183
  %v185 = vpop.f32.mrf.mxu0
  %v186 = vadd.f32 %v103, %v185
  %187 = vdwg.mxu0
  %188 = vmatprep.subr.bf16.mxu0 0
  %189 = vmatpush1.bf16.msra.mxu0 0
  %190 = vmatprep.subr.bf16.mxu0 0
  %191 = vmatpush1.bf16.msra.mxu0 0
  %192 = vmatprep.subr.bf16.mxu0 0
  %193 = vmatpush1.bf16.msra.mxu0 0
  %194 = vmatprep.subr.bf16.mxu0 0
  %195 = vmatpush1.bf16.msra.mxu0 0
  %196 = vmatprep.subr.bf16.mxu0 0
  %197 = vmatpush1.bf16.msra.mxu0 0
  %198 = vmatprep.subr.bf16.mxu0 0
  %199 = vmatpush1.bf16.msra.mxu0 0
  %200 = vmatprep.subr.bf16.mxu0 %v141
  %201 = vmatpush1.bf16.msra.mxu0 %v138
  %202 = vmatprep.subr.bf16.mxu0 %v80
  %203 = vmatpush1.bf16.msra.mxu0 %v79
  %204 = vmatprep.subr.bf16.mxu0 0
  %205 = vmatpush2.bf16.msra.mxu0 0
  %206 = vmatprep.subr.bf16.mxu0 0
  %207 = vmatpush2.bf16.msra.mxu0 0
  %208 = vmatprep.subr.bf16.mxu0 0
  %209 = vmatpush2.bf16.msra.mxu0 0
  %210 = vmatprep.subr.bf16.mxu0 0
  %211 = vmatpush2.bf16.msra.mxu0 0
  %212 = vmatprep.subr.bf16.mxu0 0
  %213 = vmatpush2.bf16.msra.mxu0 0
  %214 = vmatprep.subr.bf16.mxu0 0
  %215 = vmatpush2.bf16.msra.mxu0 0
  %216 = vmatprep.subr.bf16.mxu0 0
  %217 = vmatpush2.bf16.msra.mxu0 0
  %218 = vmatprep.subr.bf16.mxu0 0
  %219 = vmatpush2.bf16.msra.mxu0 0
  %220 = vmatprep.mubr.f32.mxu0 0.0
  %221 = vmatmul.mubr.f32.gmra.mxu0 %v128
  %v222 = vpop.f32.mrf.mxu0
  %v223 = vadd.f32 %v107, %v222
  %v224 = vpop.f32.mrf.mxu0
  %v225 = vadd.f32 %v111, %v224
  %226 = vdwg.mxu0
  %227 = vmatprep.subr.bf16.mxu0 0
  %228 = vmatpush1.bf16.msra.mxu0 0
  %229 = vmatprep.subr.bf16.mxu0 0
  %230 = vmatpush1.bf16.msra.mxu0 0
  %231 = vmatprep.subr.bf16.mxu0 0
  %232 = vmatpush1.bf16.msra.mxu0 0
  %233 = vmatprep.subr.bf16.mxu0 0
  %234 = vmatpush1.bf16.msra.mxu0 0
  %235 = vmatprep.subr.bf16.mxu0 0
  %236 = vmatpush1.bf16.msra.mxu0 0
  %237 = vmatprep.subr.bf16.mxu0 0
  %238 = vmatpush1.bf16.msra.mxu0 0
  %239 = vmatprep.subr.bf16.mxu0 %v147
  %240 = vmatpush1.bf16.msra.mxu0 %v144
  %241 = vmatprep.subr.bf16.mxu0 %v82
  %242 = vmatpush1.bf16.msra.mxu0 %v81
  %243 = vmatprep.subr.bf16.mxu0 0
  %244 = vmatpush2.bf16.msra.mxu0 0
  %245 = vmatprep.subr.bf16.mxu0 0
  %246 = vmatpush2.bf16.msra.mxu0 0
  %247 = vmatprep.subr.bf16.mxu0 0
  %248 = vmatpush2.bf16.msra.mxu0 0
  %249 = vmatprep.subr.bf16.mxu0 0
  %250 = vmatpush2.bf16.msra.mxu0 0
  %251 = vmatprep.subr.bf16.mxu0 0
  %252 = vmatpush2.bf16.msra.mxu0 0
  %253 = vmatprep.subr.bf16.mxu0 0
  %254 = vmatpush2.bf16.msra.mxu0 0
  %255 = vmatprep.subr.bf16.mxu0 0
  %256 = vmatpush2.bf16.msra.mxu0 0
  %257 = vmatprep.subr.bf16.mxu0 0
  %258 = vmatpush2.bf16.msra.mxu0 0
  %259 = vmatprep.mubr.f32.mxu0 0.0
  %260 = vmatmul.mubr.f32.gmra.mxu0 %v128
  %v261 = vpop.f32.mrf.mxu0
  %v262 = vadd.f32 %v115, %v261
  %v263 = vpop.f32.mrf.mxu0
  %v264 = vadd.f32 %v119, %v263
  %265 = vdwg.mxu0
  %v266 = vxor.u32 %v184, 2147483648
  %v267 = vxor.u32 %v186, 2147483648
  %v268 = vxor.u32 %v223, 2147483648
  %v269 = vxor.u32 %v225, 2147483648
  %v270 = vxor.u32 %v262, 2147483648
  %v271 = vxor.u32 %v264, 2147483648
  %v272 = vmul.f32 %v266, 1.442695
  %v273 = vpow.pop %v272
  %v274 = vmul.f32 %v267, 1.442695
  %v275 = vpow.pop %v274
  %v276 = vmul.f32 %v268, 1.442695
  %v277 = vpow.pop %v276
  %v278 = vmul.f32 %v269, 1.442695
  %v279 = vpow.pop %v278
  %v280 = vmul.f32 %v270, 1.442695
  %v281 = vpow.pop %v280
  %v282 = vmul.f32 %v271, 1.442695
  %v283 = vpow.pop %v282
  %v284 = vadd.f32 %v273, 1.0
  %v285 = vadd.f32 %v275, 1.0
  %v286 = vadd.f32 %v277, 1.0
  %v287 = vadd.f32 %v279, 1.0
  %v288 = vadd.f32 %v281, 1.0
  %v289 = vadd.f32 %v283, 1.0
  %v290 = vrcp.pop %v284
  %v291 = vmul.f32 1.0, %v290
  %v292 = vrcp.pop %v285
  %v293 = vmul.f32 1.0, %v292
  %v294 = vrcp.pop %v286
  %v295 = vmul.f32 1.0, %v294
  %v296 = vrcp.pop %v287
  %v297 = vmul.f32 1.0, %v296
  %v298 = vrcp.pop %v288
  %v299 = vmul.f32 1.0, %v298
  %v300 = vrcp.pop %v289
  %v301 = vmul.f32 1.0, %v300
  %v302 = vld [vmem:[%s4] sm:$0xff]
  %v303 = vld [vmem:[%s4 + $0x8] sm:$0xff]
  %v304 = vld [vmem:[%s4 + $0x10] sm:$0xff]
  %v305 = vld [vmem:[%s4 + $0x18] sm:$0xff]
  %v306 = vld [vmem:[%s4 + $0x20] sm:$0xff]
  %v307 = vld [vmem:[%s4 + $0x28] sm:$0xff]
  %v308 = vld [vmem:[%s4 + $0x30] sm:$0xff]
  %v309 = vld [vmem:[%s4 + $0x38] sm:$0xff]
  %v310 = vld [vmem:[%s4 + $0x40] sm:$0xff]
  %v311 = vld [vmem:[%s4 + $0x48] sm:$0xff]
  %v312 = vld [vmem:[%s4 + $0x50] sm:$0xff]
  %v313 = vld [vmem:[%s4 + $0x58] sm:$0xff]
  %v314 = vld [vmem:[%s4 + $0x60] sm:$0xff]
  %v315 = vld [vmem:[%s4 + $0x68] sm:$0xff]
  %v316 = vld [vmem:[%s4 + $0x70] sm:$0xff]
  %v317 = vld [vmem:[%s4 + $0x78] sm:$0xff]
  %v318 = vld [vmem:[%s4 + $0x80] sm:$0xff]
  %v319 = vld [vmem:[%s4 + $0x88] sm:$0xff]
  %v320 = vld [vmem:[%s4 + $0x90] sm:$0xff]
  %v321 = vld [vmem:[%s4 + $0x98] sm:$0xff]
  %v322 = vld [vmem:[%s4 + $0xa0] sm:$0xff]
  %v323 = vld [vmem:[%s4 + $0xa8] sm:$0xff]
  %v324 = vld [vmem:[%s4 + $0xb0] sm:$0xff]
  %v325 = vld [vmem:[%s4 + $0xb8] sm:$0xff]
  %v326 = vld [vmem:[%s4 + $0xc0] sm:$0xff]
  %v327 = vld [vmem:[%s4 + $0xc8] sm:$0xff]
  %v328 = vld [vmem:[%s4 + $0xd0] sm:$0xff]
  %v329 = vld [vmem:[%s4 + $0xd8] sm:$0xff]
  %v330 = vld [vmem:[%s4 + $0xe0] sm:$0xff]
  %v331 = vld [vmem:[%s4 + $0xe8] sm:$0xff]
  %v332 = vld [vmem:[%s4 + $0xf0] sm:$0xff]
  %v333 = vld [vmem:[%s4 + $0xf8] sm:$0xff]
  %v334 = vld [vmem:[%s4 + $0x100] sm:$0xff]
  %v335 = vld [vmem:[%s4 + $0x108] sm:$0xff]
  %v336 = vld [vmem:[%s4 + $0x110] sm:$0xff]
  %v337 = vld [vmem:[%s4 + $0x118] sm:$0xff]
  %v338 = vld [vmem:[%s4 + $0x120] sm:$0xff]
  %v339 = vld [vmem:[%s4 + $0x128] sm:$0xff]
  %v340 = vld [vmem:[%s4 + $0x130] sm:$0xff]
  %v341 = vld [vmem:[%s4 + $0x138] sm:$0xff]
  %v342 = vld [vmem:[%s4 + $0x140] sm:$0xff]
  %v343 = vld [vmem:[%s4 + $0x148] sm:$0xff]
  %v344 = vunpack.c.l.bf16 %v302
  %v345 = vunpack.c.h.bf16 %v302
  %v346 = vunpack.c.l.bf16 %v303
  %v347 = vunpack.c.h.bf16 %v303
  %v348 = vunpack.c.l.bf16 %v304
  %v349 = vunpack.c.h.bf16 %v304
  %v350 = vunpack.c.l.bf16 %v305
  %v351 = vunpack.c.h.bf16 %v305
  %v352 = vunpack.c.l.bf16 %v306
  %v353 = vunpack.c.h.bf16 %v306
  %v354 = vunpack.c.l.bf16 %v307
  %v355 = vunpack.c.h.bf16 %v307
  %v356 = vunpack.c.l.bf16 %v308
  %v357 = vunpack.c.h.bf16 %v308
  %v358 = vunpack.c.l.bf16 %v309
  %v359 = vunpack.c.h.bf16 %v309
  %v360 = vunpack.c.l.bf16 %v310
  %v361 = vunpack.c.h.bf16 %v310
  %v362 = vunpack.c.l.bf16 %v311
  %v363 = vunpack.c.h.bf16 %v311
  %v364 = vunpack.c.l.bf16 %v312
  %v365 = vunpack.c.h.bf16 %v312
  %v366 = vunpack.c.l.bf16 %v313
  %v367 = vunpack.c.h.bf16 %v313
  %v368 = vunpack.c.l.bf16 %v314
  %v369 = vunpack.c.h.bf16 %v314
  %v370 = vunpack.c.l.bf16 %v315
  %v371 = vunpack.c.h.bf16 %v315
  %v372 = vunpack.c.l.bf16 %v316
  %v373 = vunpack.c.h.bf16 %v316
  %v374 = vunpack.c.l.bf16 %v317
  %v375 = vunpack.c.h.bf16 %v317
  %v376 = vunpack.c.l.bf16 %v318
  %v377 = vunpack.c.h.bf16 %v318
  %v378 = vunpack.c.l.bf16 %v319
  %v379 = vunpack.c.h.bf16 %v319
  %v380 = vunpack.c.l.bf16 %v320
  %v381 = vunpack.c.h.bf16 %v320
  %v382 = vunpack.c.l.bf16 %v321
  %v383 = vunpack.c.h.bf16 %v321
  %v384 = vunpack.c.l.bf16 %v322
  %v385 = vunpack.c.h.bf16 %v322
  %v386 = vunpack.c.l.bf16 %v323
  %v387 = vunpack.c.h.bf16 %v323
  %v388 = vunpack.c.l.bf16 %v324
  %v389 = vunpack.c.h.bf16 %v324
  %v390 = vunpack.c.l.bf16 %v325
  %v391 = vunpack.c.h.bf16 %v325
  %v392 = vunpack.c.l.bf16 %v326
  %v393 = vunpack.c.h.bf16 %v326
  %v394 = vunpack.c.l.bf16 %v327
  %v395 = vunpack.c.h.bf16 %v327
  %v396 = vunpack.c.l.bf16 %v328
  %v397 = vunpack.c.h.bf16 %v328
  %v398 = vunpack.c.l.bf16 %v329
  %v399 = vunpack.c.h.bf16 %v329
  %v400 = vunpack.c.l.bf16 %v330
  %v401 = vunpack.c.h.bf16 %v330
  %v402 = vunpack.c.l.bf16 %v331
  %v403 = vunpack.c.h.bf16 %v331
  %v404 = vunpack.c.l.bf16 %v332
  %v405 = vunpack.c.h.bf16 %v332
  %v406 = vunpack.c.l.bf16 %v333
  %v407 = vunpack.c.h.bf16 %v333
  %v408 = vunpack.c.l.bf16 %v334
  %v409 = vunpack.c.h.bf16 %v334
  %v410 = vunpack.c.l.bf16 %v335
  %v411 = vunpack.c.h.bf16 %v335
  %v412 = vunpack.c.l.bf16 %v336
  %v413 = vunpack.c.h.bf16 %v336
  %v414 = vunpack.c.l.bf16 %v337
  %v415 = vunpack.c.h.bf16 %v337
  %v416 = vunpack.c.l.bf16 %v338
  %v417 = vunpack.c.h.bf16 %v338
  %v418 = vunpack.c.l.bf16 %v339
  %v419 = vunpack.c.h.bf16 %v339
  %v420 = vunpack.c.l.bf16 %v340
  %v421 = vunpack.c.h.bf16 %v340
  %v422 = vunpack.c.l.bf16 %v341
  %v423 = vunpack.c.h.bf16 %v341
  %v424 = vunpack.c.l.bf16 %v342
  %v425 = vunpack.c.h.bf16 %v342
  %v426 = vunpack.c.l.bf16 %v343
  %v427 = vunpack.c.h.bf16 %v343
  %v428 = vlaneseq
  %v429 = vshrl.u32 %v428, 7
  %v430 = vsub.s32 0, %v429
  %v431 = vrot.slane %v291, %v430
  %v432 = vlaneseq
  %v433 = vshrl.u32 %v432, 7
  %v434 = vsub.s32 0, %v433
  %v435 = vrot.slane %v293, %v434
  %v436 = vlaneseq
  %v437 = vshrl.u32 %v436, 7
  %v438 = vsub.s32 0, %v437
  %v439 = vrot.slane %v295, %v438
  %v440 = vlaneseq
  %v441 = vshrl.u32 %v440, 7
  %v442 = vsub.s32 0, %v441
  %v443 = vrot.slane %v297, %v442
  %v444 = vlaneseq
  %v445 = vshrl.u32 %v444, 7
  %v446 = vsub.s32 0, %v445
  %v447 = vrot.slane %v299, %v446
  %v448 = vlaneseq
  %v449 = vshrl.u32 %v448, 7
  %v450 = vsub.s32 0, %v449
  %v451 = vrot.slane %v301, %v450
  %v452 = vmul.f32 %v344, %v431
  %v453 = vmul.f32 %v345, %v435
  %v454 = vmul.f32 %v346, %v439
  %v455 = vmul.f32 %v347, %v443
  %v456 = vmul.f32 %v348, %v447
  %v457 = vmul.f32 %v349, %v451
  %v458 = vmul.f32 %v350, %v431
  %v459 = vmul.f32 %v351, %v435
  %v460 = vmul.f32 %v352, %v439
  %v461 = vmul.f32 %v353, %v443
  %v462 = vmul.f32 %v354, %v447
  %v463 = vmul.f32 %v355, %v451
  %v464 = vmul.f32 %v356, %v431
  %v465 = vmul.f32 %v357, %v435
  %v466 = vmul.f32 %v358, %v439
  %v467 = vmul.f32 %v359, %v443
  %v468 = vmul.f32 %v360, %v447
  %v469 = vmul.f32 %v361, %v451
  %v470 = vmul.f32 %v362, %v431
  %v471 = vmul.f32 %v363, %v435
  %v472 = vmul.f32 %v364, %v439
  %v473 = vmul.f32 %v365, %v443
  %v474 = vmul.f32 %v366, %v447
  %v475 = vmul.f32 %v367, %v451
  %v476 = vmul.f32 %v368, %v431
  %v477 = vmul.f32 %v369, %v435
  %v478 = vmul.f32 %v370, %v439
  %v479 = vmul.f32 %v371, %v443
  %v480 = vmul.f32 %v372, %v447
  %v481 = vmul.f32 %v373, %v451
  %v482 = vmul.f32 %v374, %v431
  %v483 = vmul.f32 %v375, %v435
  %v484 = vmul.f32 %v376, %v439
  %v485 = vmul.f32 %v377, %v443
  %v486 = vmul.f32 %v378, %v447
  %v487 = vmul.f32 %v379, %v451
  %v488 = vmul.f32 %v380, %v431
  %v489 = vmul.f32 %v381, %v435
  %v490 = vmul.f32 %v382, %v439
  %v491 = vmul.f32 %v383, %v443
  %v492 = vmul.f32 %v384, %v447
  %v493 = vmul.f32 %v385, %v451
  %v494 = vmul.f32 %v386, %v431
  %v495 = vmul.f32 %v387, %v435
  %v496 = vmul.f32 %v388, %v439
  %v497 = vmul.f32 %v389, %v443
  %v498 = vmul.f32 %v390, %v447
  %v499 = vmul.f32 %v391, %v451
  %v500 = vmul.f32 %v392, %v431
  %v501 = vmul.f32 %v393, %v435
  %v502 = vmul.f32 %v394, %v439
  %v503 = vmul.f32 %v395, %v443
  %v504 = vmul.f32 %v396, %v447
  %v505 = vmul.f32 %v397, %v451
  %v506 = vmul.f32 %v398, %v431
  %v507 = vmul.f32 %v399, %v435
  %v508 = vmul.f32 %v400, %v439
  %v509 = vmul.f32 %v401, %v443
  %v510 = vmul.f32 %v402, %v447
  %v511 = vmul.f32 %v403, %v451
  %v512 = vmul.f32 %v404, %v431
  %v513 = vmul.f32 %v405, %v435
  %v514 = vmul.f32 %v406, %v439
  %v515 = vmul.f32 %v407, %v443
  %v516 = vmul.f32 %v408, %v447
  %v517 = vmul.f32 %v409, %v451
  %v518 = vmul.f32 %v410, %v431
  %v519 = vmul.f32 %v411, %v435
  %v520 = vmul.f32 %v412, %v439
  %v521 = vmul.f32 %v413, %v443
  %v522 = vmul.f32 %v414, %v447
  %v523 = vmul.f32 %v415, %v451
  %v524 = vmul.f32 %v416, %v431
  %v525 = vmul.f32 %v417, %v435
  %v526 = vmul.f32 %v418, %v439
  %v527 = vmul.f32 %v419, %v443
  %v528 = vmul.f32 %v420, %v447
  %v529 = vmul.f32 %v421, %v451
  %v530 = vmul.f32 %v422, %v431
  %v531 = vmul.f32 %v423, %v435
  %v532 = vmul.f32 %v424, %v439
  %v533 = vmul.f32 %v425, %v443
  %v534 = vmul.f32 %v426, %v447
  %v535 = vmul.f32 %v427, %v451
  %v536 = vld [vmem:[%s3] sm:$0xff]
  %v537 = vld [vmem:[%s3 + $0x8] sm:$0xff]
  %v538 = vld [vmem:[%s3 + $0x10] sm:$0xff]
  %v539 = vld [vmem:[%s3 + $0x18] sm:$0xff]
  %v540 = vld [vmem:[%s3 + $0x20] sm:$0xff]
  %v541 = vld [vmem:[%s3 + $0x28] sm:$0xff]
  %v542 = vld [vmem:[%s3 + $0x30] sm:$0xff]
  %v543 = vld [vmem:[%s3 + $0x38] sm:$0xff]
  %v544 = vld [vmem:[%s3 + $0x40] sm:$0xff]
  %v545 = vld [vmem:[%s3 + $0x48] sm:$0xff]
  %v546 = vld [vmem:[%s3 + $0x50] sm:$0xff]
  %v547 = vld [vmem:[%s3 + $0x58] sm:$0xff]
  %v548 = vld [vmem:[%s3 + $0x60] sm:$0xff]
  %v549 = vld [vmem:[%s3 + $0x68] sm:$0xff]
  %v550 = vld [vmem:[%s3 + $0x70] sm:$0xff]
  %v551 = vld [vmem:[%s3 + $0x78] sm:$0xff]
  %v552 = vld [vmem:[%s3 + $0x80] sm:$0xff]
  %v553 = vld [vmem:[%s3 + $0x88] sm:$0xff]
  %v554 = vld [vmem:[%s3 + $0x90] sm:$0xff]
  %v555 = vld [vmem:[%s3 + $0x98] sm:$0xff]
  %v556 = vld [vmem:[%s3 + $0xa0] sm:$0xff]
  %v557 = vld [vmem:[%s3 + $0xa8] sm:$0xff]
  %v558 = vld [vmem:[%s3 + $0xb0] sm:$0xff]
  %v559 = vld [vmem:[%s3 + $0xb8] sm:$0xff]
  %v560 = vld [vmem:[%s3 + $0xc0] sm:$0xff]
  %v561 = vld [vmem:[%s3 + $0xc8] sm:$0xff]
  %v562 = vld [vmem:[%s3 + $0xd0] sm:$0xff]
  %v563 = vld [vmem:[%s3 + $0xd8] sm:$0xff]
  %v564 = vld [vmem:[%s3 + $0xe0] sm:$0xff]
  %v565 = vld [vmem:[%s3 + $0xe8] sm:$0xff]
  %v566 = vld [vmem:[%s3 + $0xf0] sm:$0xff]
  %v567 = vld [vmem:[%s3 + $0xf8] sm:$0xff]
  %v568 = vld [vmem:[%s3 + $0x100] sm:$0xff]
  %v569 = vld [vmem:[%s3 + $0x108] sm:$0xff]
  %v570 = vld [vmem:[%s3 + $0x110] sm:$0xff]
  %v571 = vld [vmem:[%s3 + $0x118] sm:$0xff]
  %v572 = vld [vmem:[%s3 + $0x120] sm:$0xff]
  %v573 = vld [vmem:[%s3 + $0x128] sm:$0xff]
  %v574 = vld [vmem:[%s3 + $0x130] sm:$0xff]
  %v575 = vld [vmem:[%s3 + $0x138] sm:$0xff]
  %v576 = vld [vmem:[%s3 + $0x140] sm:$0xff]
  %v577 = vld [vmem:[%s3 + $0x148] sm:$0xff]
  %v578 = vld [vmem:[%s3 + $0x150] sm:$0xff]
  %v579 = vld [vmem:[%s3 + $0x158] sm:$0xff]
  %v580 = vld [vmem:[%s3 + $0x160] sm:$0xff]
  %v581 = vld [vmem:[%s3 + $0x168] sm:$0xff]
  %v582 = vld [vmem:[%s3 + $0x170] sm:$0xff]
  %v583 = vld [vmem:[%s3 + $0x178] sm:$0xff]
  %v584 = vld [vmem:[%s3 + $0x180] sm:$0xff]
  %v585 = vld [vmem:[%s3 + $0x188] sm:$0xff]
  %v586 = vld [vmem:[%s3 + $0x190] sm:$0xff]
  %v587 = vld [vmem:[%s3 + $0x198] sm:$0xff]
  %v588 = vld [vmem:[%s3 + $0x1a0] sm:$0xff]
  %v589 = vld [vmem:[%s3 + $0x1a8] sm:$0xff]
  %v590 = vld [vmem:[%s3 + $0x1b0] sm:$0xff]
  %v591 = vld [vmem:[%s3 + $0x1b8] sm:$0xff]
  %v592 = vld [vmem:[%s3 + $0x1c0] sm:$0xff]
  %v593 = vld [vmem:[%s3 + $0x1c8] sm:$0xff]
  %v594 = vld [vmem:[%s3 + $0x1d0] sm:$0xff]
  %v595 = vld [vmem:[%s3 + $0x1d8] sm:$0xff]
  %v596 = vld [vmem:[%s3 + $0x1e0] sm:$0xff]
  %v597 = vld [vmem:[%s3 + $0x1e8] sm:$0xff]
  %v598 = vld [vmem:[%s3 + $0x1f0] sm:$0xff]
  %v599 = vld [vmem:[%s3 + $0x1f8] sm:$0xff]
  %v600 = vld [vmem:[%s3 + $0x200] sm:$0xff]
  %v601 = vld [vmem:[%s3 + $0x208] sm:$0xff]
  %v602 = vld [vmem:[%s3 + $0x210] sm:$0xff]
  %v603 = vld [vmem:[%s3 + $0x218] sm:$0xff]
  %v604 = vld [vmem:[%s3 + $0x220] sm:$0xff]
  %v605 = vld [vmem:[%s3 + $0x228] sm:$0xff]
  %v606 = vld [vmem:[%s3 + $0x230] sm:$0xff]
  %v607 = vld [vmem:[%s3 + $0x238] sm:$0xff]
  %v608 = vld [vmem:[%s3 + $0x240] sm:$0xff]
  %v609 = vld [vmem:[%s3 + $0x248] sm:$0xff]
  %v610 = vld [vmem:[%s3 + $0x250] sm:$0xff]
  %v611 = vld [vmem:[%s3 + $0x258] sm:$0xff]
  %v612 = vld [vmem:[%s3 + $0x260] sm:$0xff]
  %v613 = vld [vmem:[%s3 + $0x268] sm:$0xff]
  %v614 = vld [vmem:[%s3 + $0x270] sm:$0xff]
  %v615 = vld [vmem:[%s3 + $0x278] sm:$0xff]
  %v616 = vld [vmem:[%s3 + $0x280] sm:$0xff]
  %v617 = vld [vmem:[%s3 + $0x288] sm:$0xff]
  %v618 = vld [vmem:[%s3 + $0x290] sm:$0xff]
  %v619 = vld [vmem:[%s3 + $0x298] sm:$0xff]
  %v620 = vld [vmem:[%s3 + $0x2a0] sm:$0xff]
  %v621 = vld [vmem:[%s3 + $0x2a8] sm:$0xff]
  %v622 = vld [vmem:[%s3 + $0x2b0] sm:$0xff]
  %v623 = vld [vmem:[%s3 + $0x2b8] sm:$0xff]
  %v624 = vld [vmem:[%s3 + $0x2c0] sm:$0xff]
  %v625 = vld [vmem:[%s3 + $0x2c8] sm:$0xff]
  %v626 = vld [vmem:[%s3 + $0x2d0] sm:$0xff]
  %v627 = vld [vmem:[%s3 + $0x2d8] sm:$0xff]
  %v628 = vld [vmem:[%s3 + $0x2e0] sm:$0xff]
  %v629 = vld [vmem:[%s3 + $0x2e8] sm:$0xff]
  %v630 = vld [vmem:[%s3 + $0x2f0] sm:$0xff]
  %v631 = vld [vmem:[%s3 + $0x2f8] sm:$0xff]
  %v632 = vld [vmem:[%s3 + $0x300] sm:$0xff]
  %v633 = vld [vmem:[%s3 + $0x308] sm:$0xff]
  %v634 = vld [vmem:[%s3 + $0x310] sm:$0xff]
  %v635 = vld [vmem:[%s3 + $0x318] sm:$0xff]
  %v636 = vld [vmem:[%s3 + $0x320] sm:$0xff]
  %v637 = vld [vmem:[%s3 + $0x328] sm:$0xff]
  %v638 = vld [vmem:[%s3 + $0x330] sm:$0xff]
  %v639 = vld [vmem:[%s3 + $0x338] sm:$0xff]
  %v640 = vld [vmem:[%s3 + $0x340] sm:$0xff]
  %v641 = vld [vmem:[%s3 + $0x348] sm:$0xff]
  %v642 = vld [vmem:[%s3 + $0x350] sm:$0xff]
  %v643 = vld [vmem:[%s3 + $0x358] sm:$0xff]
  %v644 = vld [vmem:[%s3 + $0x360] sm:$0xff]
  %v645 = vld [vmem:[%s3 + $0x368] sm:$0xff]
  %v646 = vld [vmem:[%s3 + $0x370] sm:$0xff]
  %v647 = vld [vmem:[%s3 + $0x378] sm:$0xff]
  %v648 = vld [vmem:[%s3 + $0x380] sm:$0xff]
  %v649 = vld [vmem:[%s3 + $0x388] sm:$0xff]
  %v650 = vld [vmem:[%s3 + $0x390] sm:$0xff]
  %v651 = vld [vmem:[%s3 + $0x398] sm:$0xff]
  %v652 = vld [vmem:[%s3 + $0x3a0] sm:$0xff]
  %v653 = vld [vmem:[%s3 + $0x3a8] sm:$0xff]
  %v654 = vld [vmem:[%s3 + $0x3b0] sm:$0xff]
  %v655 = vld [vmem:[%s3 + $0x3b8] sm:$0xff]
  %v656 = vld [vmem:[%s3 + $0x3c0] sm:$0xff]
  %v657 = vld [vmem:[%s3 + $0x3c8] sm:$0xff]
  %v658 = vld [vmem:[%s3 + $0x3d0] sm:$0xff]
  %v659 = vld [vmem:[%s3 + $0x3d8] sm:$0xff]
  %v660 = vld [vmem:[%s3 + $0x3e0] sm:$0xff]
  %v661 = vld [vmem:[%s3 + $0x3e8] sm:$0xff]
  %v662 = vld [vmem:[%s3 + $0x3f0] sm:$0xff]
  %v663 = vld [vmem:[%s3 + $0x3f8] sm:$0xff]
  %v664 = vld [vmem:[%s3 + $0x400] sm:$0xff]
  %v665 = vld [vmem:[%s3 + $0x408] sm:$0xff]
  %v666 = vld [vmem:[%s3 + $0x410] sm:$0xff]
  %v667 = vld [vmem:[%s3 + $0x418] sm:$0xff]
  %v668 = vld [vmem:[%s3 + $0x420] sm:$0xff]
  %v669 = vld [vmem:[%s3 + $0x428] sm:$0xff]
  %v670 = vld [vmem:[%s3 + $0x430] sm:$0xff]
  %v671 = vld [vmem:[%s3 + $0x438] sm:$0xff]
  %v672 = vld [vmem:[%s3 + $0x440] sm:$0xff]
  %v673 = vld [vmem:[%s3 + $0x448] sm:$0xff]
  %v674 = vld [vmem:[%s3 + $0x450] sm:$0xff]
  %v675 = vld [vmem:[%s3 + $0x458] sm:$0xff]
  %v676 = vld [vmem:[%s3 + $0x460] sm:$0xff]
  %v677 = vld [vmem:[%s3 + $0x468] sm:$0xff]
  %v678 = vld [vmem:[%s3 + $0x470] sm:$0xff]
  %v679 = vld [vmem:[%s3 + $0x478] sm:$0xff]
  %v680 = vld [vmem:[%s3 + $0x480] sm:$0xff]
  %v681 = vld [vmem:[%s3 + $0x488] sm:$0xff]
  %v682 = vld [vmem:[%s3 + $0x490] sm:$0xff]
  %v683 = vld [vmem:[%s3 + $0x498] sm:$0xff]
  %v684 = vld [vmem:[%s3 + $0x4a0] sm:$0xff]
  %v685 = vld [vmem:[%s3 + $0x4a8] sm:$0xff]
  %v686 = vld [vmem:[%s3 + $0x4b0] sm:$0xff]
  %v687 = vld [vmem:[%s3 + $0x4b8] sm:$0xff]
  %v688 = vld [vmem:[%s3 + $0x4c0] sm:$0xff]
  %v689 = vld [vmem:[%s3 + $0x4c8] sm:$0xff]
  %v690 = vld [vmem:[%s3 + $0x4d0] sm:$0xff]
  %v691 = vld [vmem:[%s3 + $0x4d8] sm:$0xff]
  %v692 = vld [vmem:[%s3 + $0x4e0] sm:$0xff]
  %v693 = vld [vmem:[%s3 + $0x4e8] sm:$0xff]
  %v694 = vld [vmem:[%s3 + $0x4f0] sm:$0xff]
  %v695 = vld [vmem:[%s3 + $0x4f8] sm:$0xff]
  %v696 = vld [vmem:[%s3 + $0x500] sm:$0xff]
  %v697 = vld [vmem:[%s3 + $0x508] sm:$0xff]
  %v698 = vld [vmem:[%s3 + $0x510] sm:$0xff]
  %v699 = vld [vmem:[%s3 + $0x518] sm:$0xff]
  %v700 = vld [vmem:[%s3 + $0x520] sm:$0xff]
  %v701 = vld [vmem:[%s3 + $0x528] sm:$0xff]
  %v702 = vld [vmem:[%s3 + $0x530] sm:$0xff]
  %v703 = vld [vmem:[%s3 + $0x538] sm:$0xff]
  %vm704 = vcmask 261120
  %v706 = vsel %vm704, %v457, 0
  %v709 = vsel %vm704, %v463, 0
  %v712 = vsel %vm704, %v469, 0
  %v715 = vsel %vm704, %v475, 0
  %v718 = vsel %vm704, %v481, 0
  %v721 = vsel %vm704, %v487, 0
  %v724 = vsel %vm704, %v493, 0
  %v727 = vsel %vm704, %v499, 0
  %v730 = vsel %vm704, %v505, 0
  %v733 = vsel %vm704, %v511, 0
  %v736 = vsel %vm704, %v517, 0
  %v739 = vsel %vm704, %v523, 0
  %v742 = vsel %vm704, %v529, 0
  %v745 = vsel %vm704, %v535, 0
  %747 = vmatprep.subr.mxu0 %v567
  %748 = vmatpush1.msra.mxu0 %v566
  %749 = vmatprep.subr.mxu0 %v565
  %750 = vmatpush1.msra.mxu0 %v564
  %751 = vmatprep.subr.mxu0 %v563
  %752 = vmatpush1.msra.mxu0 %v562
  %753 = vmatprep.subr.mxu0 %v561
  %754 = vmatpush1.msra.mxu0 %v560
  %755 = vmatprep.subr.mxu0 %v559
  %756 = vmatpush1.msra.mxu0 %v558
  %757 = vmatprep.subr.mxu0 %v557
  %758 = vmatpush1.msra.mxu0 %v556
  %759 = vmatprep.subr.mxu0 %v555
  %760 = vmatpush1.msra.mxu0 %v554
  %761 = vmatprep.subr.mxu0 %v553
  %762 = vmatpush1.msra.mxu0 %v552
  %763 = vmatprep.subr.mxu0 %v551
  %764 = vmatpush1.msra.mxu0 %v550
  %765 = vmatprep.subr.mxu0 %v549
  %766 = vmatpush1.msra.mxu0 %v548
  %767 = vmatprep.subr.mxu0 %v547
  %768 = vmatpush1.msra.mxu0 %v546
  %769 = vmatprep.subr.mxu0 %v545
  %770 = vmatpush1.msra.mxu0 %v544
  %771 = vmatprep.subr.mxu0 %v543
  %772 = vmatpush1.msra.mxu0 %v542
  %773 = vmatprep.subr.mxu0 %v541
  %774 = vmatpush1.msra.mxu0 %v540
  %775 = vmatprep.subr.mxu0 %v539
  %776 = vmatpush1.msra.mxu0 %v538
  %777 = vmatprep.subr.mxu0 %v537
  %778 = vmatpush1.msra.mxu0 %v536
  %779 = vmatprep.subr.mxu0 %v599
  %780 = vmatpush2.msra.mxu0 %v598
  %781 = vmatprep.subr.mxu0 %v597
  %782 = vmatpush2.msra.mxu0 %v596
  %783 = vmatprep.subr.mxu0 %v595
  %784 = vmatpush2.msra.mxu0 %v594
  %785 = vmatprep.subr.mxu0 %v593
  %786 = vmatpush2.msra.mxu0 %v592
  %787 = vmatprep.subr.mxu0 %v591
  %788 = vmatpush2.msra.mxu0 %v590
  %789 = vmatprep.subr.mxu0 %v589
  %790 = vmatpush2.msra.mxu0 %v588
  %791 = vmatprep.subr.mxu0 %v587
  %792 = vmatpush2.msra.mxu0 %v586
  %793 = vmatprep.subr.mxu0 %v585
  %794 = vmatpush2.msra.mxu0 %v584
  %795 = vmatprep.subr.mxu0 %v583
  %796 = vmatpush2.msra.mxu0 %v582
  %797 = vmatprep.subr.mxu0 %v581
  %798 = vmatpush2.msra.mxu0 %v580
  %799 = vmatprep.subr.mxu0 %v579
  %800 = vmatpush2.msra.mxu0 %v578
  %801 = vmatprep.subr.mxu0 %v577
  %802 = vmatpush2.msra.mxu0 %v576
  %803 = vmatprep.subr.mxu0 %v575
  %804 = vmatpush2.msra.mxu0 %v574
  %805 = vmatprep.subr.mxu0 %v573
  %806 = vmatpush2.msra.mxu0 %v572
  %807 = vmatprep.subr.mxu0 %v571
  %808 = vmatpush2.msra.mxu0 %v570
  %809 = vmatprep.subr.mxu0 %v569
  %810 = vmatpush2.msra.mxu0 %v568
  %811 = vmatprep.mubr.f32.mxu0 %v453
  %812 = vmatmul.mubr.f32.gmra.mxu0 %v452
  %v813 = vpop.f32.mrf.mxu0
  %v814 = vadd.f32 0.0, %v813
  %v815 = vpop.f32.mrf.mxu0
  %v816 = vadd.f32 0.0, %v815
  %817 = vmatprep.mubr.f32.mxu0 %v459
  %818 = vmatmul.mubr.f32.gmra.mxu0 %v458
  %v819 = vpop.f32.mrf.mxu0
  %v820 = vadd.f32 0.0, %v819
  %v821 = vpop.f32.mrf.mxu0
  %v822 = vadd.f32 0.0, %v821
  %823 = vmatprep.mubr.f32.mxu0 %v465
  %824 = vmatmul.mubr.f32.gmra.mxu0 %v464
  %v825 = vpop.f32.mrf.mxu0
  %v826 = vadd.f32 0.0, %v825
  %v827 = vpop.f32.mrf.mxu0
  %v828 = vadd.f32 0.0, %v827
  %829 = vmatprep.mubr.f32.mxu0 %v471
  %830 = vmatmul.mubr.f32.gmra.mxu0 %v470
  %v831 = vpop.f32.mrf.mxu0
  %v832 = vadd.f32 0.0, %v831
  %v833 = vpop.f32.mrf.mxu0
  %v834 = vadd.f32 0.0, %v833
  %835 = vmatprep.mubr.f32.mxu0 %v477
  %836 = vmatmul.mubr.f32.gmra.mxu0 %v476
  %v837 = vpop.f32.mrf.mxu0
  %v838 = vadd.f32 0.0, %v837
  %v839 = vpop.f32.mrf.mxu0
  %v840 = vadd.f32 0.0, %v839
  %841 = vmatprep.mubr.f32.mxu0 %v483
  %842 = vmatmul.mubr.f32.gmra.mxu0 %v482
  %v843 = vpop.f32.mrf.mxu0
  %v844 = vadd.f32 0.0, %v843
  %v845 = vpop.f32.mrf.mxu0
  %v846 = vadd.f32 0.0, %v845
  %847 = vmatprep.mubr.f32.mxu0 %v489
  %848 = vmatmul.mubr.f32.gmra.mxu0 %v488
  %v849 = vpop.f32.mrf.mxu0
  %v850 = vadd.f32 0.0, %v849
  %v851 = vpop.f32.mrf.mxu0
  %v852 = vadd.f32 0.0, %v851
  %853 = vmatprep.mubr.f32.mxu0 %v495
  %854 = vmatmul.mubr.f32.gmra.mxu0 %v494
  %v855 = vpop.f32.mrf.mxu0
  %v856 = vadd.f32 0.0, %v855
  %v857 = vpop.f32.mrf.mxu0
  %v858 = vadd.f32 0.0, %v857
  %859 = vmatprep.mubr.f32.mxu0 %v501
  %860 = vmatmul.mubr.f32.gmra.mxu0 %v500
  %v861 = vpop.f32.mrf.mxu0
  %v862 = vadd.f32 0.0, %v861
  %v863 = vpop.f32.mrf.mxu0
  %v864 = vadd.f32 0.0, %v863
  %865 = vmatprep.mubr.f32.mxu0 %v507
  %866 = vmatmul.mubr.f32.gmra.mxu0 %v506
  %v867 = vpop.f32.mrf.mxu0
  %v868 = vadd.f32 0.0, %v867
  %v869 = vpop.f32.mrf.mxu0
  %v870 = vadd.f32 0.0, %v869
  %871 = vmatprep.mubr.f32.mxu0 %v513
  %872 = vmatmul.mubr.f32.gmra.mxu0 %v512
  %v873 = vpop.f32.mrf.mxu0
  %v874 = vadd.f32 0.0, %v873
  %v875 = vpop.f32.mrf.mxu0
  %v876 = vadd.f32 0.0, %v875
  %877 = vmatprep.mubr.f32.mxu0 %v519
  %878 = vmatmul.mubr.f32.gmra.mxu0 %v518
  %v879 = vpop.f32.mrf.mxu0
  %v880 = vadd.f32 0.0, %v879
  %v881 = vpop.f32.mrf.mxu0
  %v882 = vadd.f32 0.0, %v881
  %883 = vmatprep.mubr.f32.mxu0 %v525
  %884 = vmatmul.mubr.f32.gmra.mxu0 %v524
  %v885 = vpop.f32.mrf.mxu0
  %v886 = vadd.f32 0.0, %v885
  %v887 = vpop.f32.mrf.mxu0
  %v888 = vadd.f32 0.0, %v887
  %889 = vmatprep.mubr.f32.mxu0 %v531
  %890 = vmatmul.mubr.f32.gmra.mxu0 %v530
  %v891 = vpop.f32.mrf.mxu0
  %v892 = vadd.f32 0.0, %v891
  %v893 = vpop.f32.mrf.mxu0
  %v894 = vadd.f32 0.0, %v893
  %895 = vdwg.mxu0
  %896 = vmatprep.subr.mxu0 %v631
  %897 = vmatpush1.msra.mxu0 %v630
  %898 = vmatprep.subr.mxu0 %v629
  %899 = vmatpush1.msra.mxu0 %v628
  %900 = vmatprep.subr.mxu0 %v627
  %901 = vmatpush1.msra.mxu0 %v626
  %902 = vmatprep.subr.mxu0 %v625
  %903 = vmatpush1.msra.mxu0 %v624
  %904 = vmatprep.subr.mxu0 %v623
  %905 = vmatpush1.msra.mxu0 %v622
  %906 = vmatprep.subr.mxu0 %v621
  %907 = vmatpush1.msra.mxu0 %v620
  %908 = vmatprep.subr.mxu0 %v619
  %909 = vmatpush1.msra.mxu0 %v618
  %910 = vmatprep.subr.mxu0 %v617
  %911 = vmatpush1.msra.mxu0 %v616
  %912 = vmatprep.subr.mxu0 %v615
  %913 = vmatpush1.msra.mxu0 %v614
  %914 = vmatprep.subr.mxu0 %v613
  %915 = vmatpush1.msra.mxu0 %v612
  %916 = vmatprep.subr.mxu0 %v611
  %917 = vmatpush1.msra.mxu0 %v610
  %918 = vmatprep.subr.mxu0 %v609
  %919 = vmatpush1.msra.mxu0 %v608
  %920 = vmatprep.subr.mxu0 %v607
  %921 = vmatpush1.msra.mxu0 %v606
  %922 = vmatprep.subr.mxu0 %v605
  %923 = vmatpush1.msra.mxu0 %v604
  %924 = vmatprep.subr.mxu0 %v603
  %925 = vmatpush1.msra.mxu0 %v602
  %926 = vmatprep.subr.mxu0 %v601
  %927 = vmatpush1.msra.mxu0 %v600
  %928 = vmatprep.subr.mxu0 %v663
  %929 = vmatpush2.msra.mxu0 %v662
  %930 = vmatprep.subr.mxu0 %v661
  %931 = vmatpush2.msra.mxu0 %v660
  %932 = vmatprep.subr.mxu0 %v659
  %933 = vmatpush2.msra.mxu0 %v658
  %934 = vmatprep.subr.mxu0 %v657
  %935 = vmatpush2.msra.mxu0 %v656
  %936 = vmatprep.subr.mxu0 %v655
  %937 = vmatpush2.msra.mxu0 %v654
  %938 = vmatprep.subr.mxu0 %v653
  %939 = vmatpush2.msra.mxu0 %v652
  %940 = vmatprep.subr.mxu0 %v651
  %941 = vmatpush2.msra.mxu0 %v650
  %942 = vmatprep.subr.mxu0 %v649
  %943 = vmatpush2.msra.mxu0 %v648
  %944 = vmatprep.subr.mxu0 %v647
  %945 = vmatpush2.msra.mxu0 %v646
  %946 = vmatprep.subr.mxu0 %v645
  %947 = vmatpush2.msra.mxu0 %v644
  %948 = vmatprep.subr.mxu0 %v643
  %949 = vmatpush2.msra.mxu0 %v642
  %950 = vmatprep.subr.mxu0 %v641
  %951 = vmatpush2.msra.mxu0 %v640
  %952 = vmatprep.subr.mxu0 %v639
  %953 = vmatpush2.msra.mxu0 %v638
  %954 = vmatprep.subr.mxu0 %v637
  %955 = vmatpush2.msra.mxu0 %v636
  %956 = vmatprep.subr.mxu0 %v635
  %957 = vmatpush2.msra.mxu0 %v634
  %958 = vmatprep.subr.mxu0 %v633
  %959 = vmatpush2.msra.mxu0 %v632
  %960 = vmatprep.mubr.f32.mxu0 %v455
  %961 = vmatmul.mubr.f32.gmra.mxu0 %v454
  %v962 = vpop.f32.mrf.mxu0
  %v963 = vadd.f32 %v814, %v962
  %v964 = vpop.f32.mrf.mxu0
  %v965 = vadd.f32 %v816, %v964
  %966 = vmatprep.mubr.f32.mxu0 %v461
  %967 = vmatmul.mubr.f32.gmra.mxu0 %v460
  %v968 = vpop.f32.mrf.mxu0
  %v969 = vadd.f32 %v820, %v968
  %v970 = vpop.f32.mrf.mxu0
  %v971 = vadd.f32 %v822, %v970
  %972 = vmatprep.mubr.f32.mxu0 %v467
  %973 = vmatmul.mubr.f32.gmra.mxu0 %v466
  %v974 = vpop.f32.mrf.mxu0
  %v975 = vadd.f32 %v826, %v974
  %v976 = vpop.f32.mrf.mxu0
  %v977 = vadd.f32 %v828, %v976
  %978 = vmatprep.mubr.f32.mxu0 %v473
  %979 = vmatmul.mubr.f32.gmra.mxu0 %v472
  %v980 = vpop.f32.mrf.mxu0
  %v981 = vadd.f32 %v832, %v980
  %v982 = vpop.f32.mrf.mxu0
  %v983 = vadd.f32 %v834, %v982
  %984 = vmatprep.mubr.f32.mxu0 %v479
  %985 = vmatmul.mubr.f32.gmra.mxu0 %v478
  %v986 = vpop.f32.mrf.mxu0
  %v987 = vadd.f32 %v838, %v986
  %v988 = vpop.f32.mrf.mxu0
  %v989 = vadd.f32 %v840, %v988
  %990 = vmatprep.mubr.f32.mxu0 %v485
  %991 = vmatmul.mubr.f32.gmra.mxu0 %v484
  %v992 = vpop.f32.mrf.mxu0
  %v993 = vadd.f32 %v844, %v992
  %v994 = vpop.f32.mrf.mxu0
  %v995 = vadd.f32 %v846, %v994
  %996 = vmatprep.mubr.f32.mxu0 %v491
  %997 = vmatmul.mubr.f32.gmra.mxu0 %v490
  %v998 = vpop.f32.mrf.mxu0
  %v999 = vadd.f32 %v850, %v998
  %v1000 = vpop.f32.mrf.mxu0
  %v1001 = vadd.f32 %v852, %v1000
  %1002 = vmatprep.mubr.f32.mxu0 %v497
  %1003 = vmatmul.mubr.f32.gmra.mxu0 %v496
  %v1004 = vpop.f32.mrf.mxu0
  %v1005 = vadd.f32 %v856, %v1004
  %v1006 = vpop.f32.mrf.mxu0
  %v1007 = vadd.f32 %v858, %v1006
  %1008 = vmatprep.mubr.f32.mxu0 %v503
  %1009 = vmatmul.mubr.f32.gmra.mxu0 %v502
  %v1010 = vpop.f32.mrf.mxu0
  %v1011 = vadd.f32 %v862, %v1010
  %v1012 = vpop.f32.mrf.mxu0
  %v1013 = vadd.f32 %v864, %v1012
  %1014 = vmatprep.mubr.f32.mxu0 %v509
  %1015 = vmatmul.mubr.f32.gmra.mxu0 %v508
  %v1016 = vpop.f32.mrf.mxu0
  %v1017 = vadd.f32 %v868, %v1016
  %v1018 = vpop.f32.mrf.mxu0
  %v1019 = vadd.f32 %v870, %v1018
  %1020 = vmatprep.mubr.f32.mxu0 %v515
  %1021 = vmatmul.mubr.f32.gmra.mxu0 %v514
  %v1022 = vpop.f32.mrf.mxu0
  %v1023 = vadd.f32 %v874, %v1022
  %v1024 = vpop.f32.mrf.mxu0
  %v1025 = vadd.f32 %v876, %v1024
  %1026 = vmatprep.mubr.f32.mxu0 %v521
  %1027 = vmatmul.mubr.f32.gmra.mxu0 %v520
  %v1028 = vpop.f32.mrf.mxu0
  %v1029 = vadd.f32 %v880, %v1028
  %v1030 = vpop.f32.mrf.mxu0
  %v1031 = vadd.f32 %v882, %v1030
  %1032 = vmatprep.mubr.f32.mxu0 %v527
  %1033 = vmatmul.mubr.f32.gmra.mxu0 %v526
  %v1034 = vpop.f32.mrf.mxu0
  %v1035 = vadd.f32 %v886, %v1034
  %v1036 = vpop.f32.mrf.mxu0
  %v1037 = vadd.f32 %v888, %v1036
  %1038 = vmatprep.mubr.f32.mxu0 %v533
  %1039 = vmatmul.mubr.f32.gmra.mxu0 %v532
  %v1040 = vpop.f32.mrf.mxu0
  %v1041 = vadd.f32 %v892, %v1040
  %v1042 = vpop.f32.mrf.mxu0
  %v1043 = vadd.f32 %v894, %v1042
  %1044 = vdwg.mxu0
  %1045 = vmatprep.subr.mxu0 %v695
  %1046 = vmatpush1.msra.mxu0 %v694
  %1047 = vmatprep.subr.mxu0 %v693
  %1048 = vmatpush1.msra.mxu0 %v692
  %1049 = vmatprep.subr.mxu0 %v691
  %1050 = vmatpush1.msra.mxu0 %v690
  %1051 = vmatprep.subr.mxu0 %v689
  %1052 = vmatpush1.msra.mxu0 %v688
  %1053 = vmatprep.subr.mxu0 %v687
  %1054 = vmatpush1.msra.mxu0 %v686
  %1055 = vmatprep.subr.mxu0 %v685
  %1056 = vmatpush1.msra.mxu0 %v684
  %1057 = vmatprep.subr.mxu0 %v683
  %1058 = vmatpush1.msra.mxu0 %v682
  %1059 = vmatprep.subr.mxu0 %v681
  %1060 = vmatpush1.msra.mxu0 %v680
  %1061 = vmatprep.subr.mxu0 %v679
  %1062 = vmatpush1.msra.mxu0 %v678
  %1063 = vmatprep.subr.mxu0 %v677
  %1064 = vmatpush1.msra.mxu0 %v676
  %1065 = vmatprep.subr.mxu0 %v675
  %1066 = vmatpush1.msra.mxu0 %v674
  %1067 = vmatprep.subr.mxu0 %v673
  %1068 = vmatpush1.msra.mxu0 %v672
  %1069 = vmatprep.subr.mxu0 %v671
  %1070 = vmatpush1.msra.mxu0 %v670
  %1071 = vmatprep.subr.mxu0 %v669
  %1072 = vmatpush1.msra.mxu0 %v668
  %1073 = vmatprep.subr.mxu0 %v667
  %1074 = vmatpush1.msra.mxu0 %v666
  %1075 = vmatprep.subr.mxu0 %v665
  %1076 = vmatpush1.msra.mxu0 %v664
  %1077 = vmatprep.subr.mxu0 0.0
  %1078 = vmatpush2.msra.mxu0 0.0
  %1079 = vmatprep.subr.mxu0 0.0
  %1080 = vmatpush2.msra.mxu0 0.0
  %1081 = vmatprep.subr.mxu0 0.0
  %1082 = vmatpush2.msra.mxu0 0.0
  %1083 = vmatprep.subr.mxu0 0.0
  %1084 = vmatpush2.msra.mxu0 0.0
  %1085 = vmatprep.subr.mxu0 0.0
  %1086 = vmatpush2.msra.mxu0 0.0
  %1087 = vmatprep.subr.mxu0 0.0
  %1088 = vmatpush2.msra.mxu0 0.0
  %1089 = vmatprep.subr.mxu0 0.0
  %1090 = vmatpush2.msra.mxu0 0.0
  %1091 = vmatprep.subr.mxu0 0.0
  %1092 = vmatpush2.msra.mxu0 0.0
  %1093 = vmatprep.subr.mxu0 0.0
  %1094 = vmatpush2.msra.mxu0 0.0
  %1095 = vmatprep.subr.mxu0 0.0
  %1096 = vmatpush2.msra.mxu0 0.0
  %1097 = vmatprep.subr.mxu0 0.0
  %1098 = vmatpush2.msra.mxu0 0.0
  %1099 = vmatprep.subr.mxu0 0.0
  %1100 = vmatpush2.msra.mxu0 0.0
  %1101 = vmatprep.subr.mxu0 %v703
  %1102 = vmatpush2.msra.mxu0 %v702
  %1103 = vmatprep.subr.mxu0 %v701
  %1104 = vmatpush2.msra.mxu0 %v700
  %1105 = vmatprep.subr.mxu0 %v699
  %1106 = vmatpush2.msra.mxu0 %v698
  %1107 = vmatprep.subr.mxu0 %v697
  %1108 = vmatpush2.msra.mxu0 %v696
  %1109 = vmatprep.mubr.f32.mxu0 %v706
  %1110 = vmatmul.mubr.f32.gmra.mxu0 %v456
  %v1111 = vpop.f32.mrf.mxu0
  %v1112 = vadd.f32 %v963, %v1111
  %v1113 = vpop.f32.mrf.mxu0
  %v1114 = vadd.f32 %v965, %v1113
  %1115 = vmatprep.mubr.f32.mxu0 %v709
  %1116 = vmatmul.mubr.f32.gmra.mxu0 %v462
  %v1117 = vpop.f32.mrf.mxu0
  %v1118 = vadd.f32 %v969, %v1117
  %v1119 = vpop.f32.mrf.mxu0
  %v1120 = vadd.f32 %v971, %v1119
  %1121 = vmatprep.mubr.f32.mxu0 %v712
  %1122 = vmatmul.mubr.f32.gmra.mxu0 %v468
  %v1123 = vpop.f32.mrf.mxu0
  %v1124 = vadd.f32 %v975, %v1123
  %v1125 = vpop.f32.mrf.mxu0
  %v1126 = vadd.f32 %v977, %v1125
  %1127 = vmatprep.mubr.f32.mxu0 %v715
  %1128 = vmatmul.mubr.f32.gmra.mxu0 %v474
  %v1129 = vpop.f32.mrf.mxu0
  %v1130 = vadd.f32 %v981, %v1129
  %v1131 = vpop.f32.mrf.mxu0
  %v1132 = vadd.f32 %v983, %v1131
  %1133 = vmatprep.mubr.f32.mxu0 %v718
  %1134 = vmatmul.mubr.f32.gmra.mxu0 %v480
  %v1135 = vpop.f32.mrf.mxu0
  %v1136 = vadd.f32 %v987, %v1135
  %v1137 = vpop.f32.mrf.mxu0
  %v1138 = vadd.f32 %v989, %v1137
  %1139 = vmatprep.mubr.f32.mxu0 %v721
  %1140 = vmatmul.mubr.f32.gmra.mxu0 %v486
  %v1141 = vpop.f32.mrf.mxu0
  %v1142 = vadd.f32 %v993, %v1141
  %v1143 = vpop.f32.mrf.mxu0
  %v1144 = vadd.f32 %v995, %v1143
  %1145 = vmatprep.mubr.f32.mxu0 %v724
  %1146 = vmatmul.mubr.f32.gmra.mxu0 %v492
  %v1147 = vpop.f32.mrf.mxu0
  %v1148 = vadd.f32 %v999, %v1147
  %v1149 = vpop.f32.mrf.mxu0
  %v1150 = vadd.f32 %v1001, %v1149
  %1151 = vmatprep.mubr.f32.mxu0 %v727
  %1152 = vmatmul.mubr.f32.gmra.mxu0 %v498
  %v1153 = vpop.f32.mrf.mxu0
  %v1154 = vadd.f32 %v1005, %v1153
  %v1155 = vpop.f32.mrf.mxu0
  %v1156 = vadd.f32 %v1007, %v1155
  %1157 = vmatprep.mubr.f32.mxu0 %v730
  %1158 = vmatmul.mubr.f32.gmra.mxu0 %v504
  %v1159 = vpop.f32.mrf.mxu0
  %v1160 = vadd.f32 %v1011, %v1159
  %v1161 = vpop.f32.mrf.mxu0
  %v1162 = vadd.f32 %v1013, %v1161
  %1163 = vmatprep.mubr.f32.mxu0 %v733
  %1164 = vmatmul.mubr.f32.gmra.mxu0 %v510
  %v1165 = vpop.f32.mrf.mxu0
  %v1166 = vadd.f32 %v1017, %v1165
  %v1167 = vpop.f32.mrf.mxu0
  %v1168 = vadd.f32 %v1019, %v1167
  %1169 = vmatprep.mubr.f32.mxu0 %v736
  %1170 = vmatmul.mubr.f32.gmra.mxu0 %v516
  %v1171 = vpop.f32.mrf.mxu0
  %v1172 = vadd.f32 %v1023, %v1171
  %v1173 = vpop.f32.mrf.mxu0
  %v1174 = vadd.f32 %v1025, %v1173
  %1175 = vmatprep.mubr.f32.mxu0 %v739
  %1176 = vmatmul.mubr.f32.gmra.mxu0 %v522
  %v1177 = vpop.f32.mrf.mxu0
  %v1178 = vadd.f32 %v1029, %v1177
  %v1179 = vpop.f32.mrf.mxu0
  %v1180 = vadd.f32 %v1031, %v1179
  %1181 = vmatprep.mubr.f32.mxu0 %v742
  %1182 = vmatmul.mubr.f32.gmra.mxu0 %v528
  %v1183 = vpop.f32.mrf.mxu0
  %v1184 = vadd.f32 %v1035, %v1183
  %v1185 = vpop.f32.mrf.mxu0
  %v1186 = vadd.f32 %v1037, %v1185
  %1187 = vmatprep.mubr.f32.mxu0 %v745
  %1188 = vmatmul.mubr.f32.gmra.mxu0 %v534
  %v1189 = vpop.f32.mrf.mxu0
  %v1190 = vadd.f32 %v1041, %v1189
  %v1191 = vpop.f32.mrf.mxu0
  %v1192 = vadd.f32 %v1043, %v1191
  %1193 = vdwg.mxu0
  %vm1194 = vcmask 556032
  %v1195 = vsel %vm1194, %v1114, 0.0
  %v1196 = vadd.f32 %v1112, %v1195
  %1197 = vadd.xlane.f32.xlu0 %v1196
  %v1198 = vpop.xlane.xlu0 %1197
  %v1199 = vsel %vm1194, %v1120, 0.0
  %v1200 = vadd.f32 %v1118, %v1199
  %1201 = vadd.xlane.f32.xlu0 %v1200
  %v1202 = vpop.xlane.xlu0 %1201
  %v1203 = vsel %vm1194, %v1126, 0.0
  %v1204 = vadd.f32 %v1124, %v1203
  %1205 = vadd.xlane.f32.xlu0 %v1204
  %v1206 = vpop.xlane.xlu0 %1205
  %v1207 = vsel %vm1194, %v1132, 0.0
  %v1208 = vadd.f32 %v1130, %v1207
  %1209 = vadd.xlane.f32.xlu0 %v1208
  %v1210 = vpop.xlane.xlu0 %1209
  %v1211 = vsel %vm1194, %v1138, 0.0
  %v1212 = vadd.f32 %v1136, %v1211
  %1213 = vadd.xlane.f32.xlu0 %v1212
  %v1214 = vpop.xlane.xlu0 %1213
  %v1215 = vsel %vm1194, %v1144, 0.0
  %v1216 = vadd.f32 %v1142, %v1215
  %1217 = vadd.xlane.f32.xlu0 %v1216
  %v1218 = vpop.xlane.xlu0 %1217
  %v1219 = vsel %vm1194, %v1150, 0.0
  %v1220 = vadd.f32 %v1148, %v1219
  %1221 = vadd.xlane.f32.xlu0 %v1220
  %v1222 = vpop.xlane.xlu0 %1221
  %v1223 = vsel %vm1194, %v1156, 0.0
  %v1224 = vadd.f32 %v1154, %v1223
  %1225 = vadd.xlane.f32.xlu0 %v1224
  %v1226 = vpop.xlane.xlu0 %1225
  %v1227 = vsel %vm1194, %v1162, 0.0
  %v1228 = vadd.f32 %v1160, %v1227
  %1229 = vadd.xlane.f32.xlu0 %v1228
  %v1230 = vpop.xlane.xlu0 %1229
  %v1231 = vsel %vm1194, %v1168, 0.0
  %v1232 = vadd.f32 %v1166, %v1231
  %1233 = vadd.xlane.f32.xlu0 %v1232
  %v1234 = vpop.xlane.xlu0 %1233
  %v1235 = vsel %vm1194, %v1174, 0.0
  %v1236 = vadd.f32 %v1172, %v1235
  %1237 = vadd.xlane.f32.xlu0 %v1236
  %v1238 = vpop.xlane.xlu0 %1237
  %v1239 = vsel %vm1194, %v1180, 0.0
  %v1240 = vadd.f32 %v1178, %v1239
  %1241 = vadd.xlane.f32.xlu0 %v1240
  %v1242 = vpop.xlane.xlu0 %1241
  %v1243 = vsel %vm1194, %v1186, 0.0
  %v1244 = vadd.f32 %v1184, %v1243
  %1245 = vadd.xlane.f32.xlu0 %v1244
  %v1246 = vpop.xlane.xlu0 %1245
  %v1247 = vsel %vm1194, %v1192, 0.0
  %v1248 = vadd.f32 %v1190, %v1247
  %1249 = vadd.xlane.f32.xlu0 %v1248
  %v1250 = vpop.xlane.xlu0 %1249
  %v1251 = vmul.f32 %v1198, 0.0051020407
  %v1252 = vmul.f32 %v1202, 0.0051020407
  %v1253 = vmul.f32 %v1206, 0.0051020407
  %v1254 = vmul.f32 %v1210, 0.0051020407
  %v1255 = vmul.f32 %v1214, 0.0051020407
  %v1256 = vmul.f32 %v1218, 0.0051020407
  %v1257 = vmul.f32 %v1222, 0.0051020407
  %v1258 = vmul.f32 %v1226, 0.0051020407
  %v1259 = vmul.f32 %v1230, 0.0051020407
  %v1260 = vmul.f32 %v1234, 0.0051020407
  %v1261 = vmul.f32 %v1238, 0.0051020407
  %v1262 = vmul.f32 %v1242, 0.0051020407
  %v1263 = vmul.f32 %v1246, 0.0051020407
  %v1264 = vmul.f32 %v1250, 0.0051020407
  %v1265 = vsub.f32 %v1112, %v1251
  %v1266 = vsub.f32 %v1114, %v1251
  %v1267 = vsub.f32 %v1118, %v1252
  %v1268 = vsub.f32 %v1120, %v1252
  %v1269 = vsub.f32 %v1124, %v1253
  %v1270 = vsub.f32 %v1126, %v1253
  %v1271 = vsub.f32 %v1130, %v1254
  %v1272 = vsub.f32 %v1132, %v1254
  %v1273 = vsub.f32 %v1136, %v1255
  %v1274 = vsub.f32 %v1138, %v1255
  %v1275 = vsub.f32 %v1142, %v1256
  %v1276 = vsub.f32 %v1144, %v1256
  %v1277 = vsub.f32 %v1148, %v1257
  %v1278 = vsub.f32 %v1150, %v1257
  %v1279 = vsub.f32 %v1154, %v1258
  %v1280 = vsub.f32 %v1156, %v1258
  %v1281 = vsub.f32 %v1160, %v1259
  %v1282 = vsub.f32 %v1162, %v1259
  %v1283 = vsub.f32 %v1166, %v1260
  %v1284 = vsub.f32 %v1168, %v1260
  %v1285 = vsub.f32 %v1172, %v1261
  %v1286 = vsub.f32 %v1174, %v1261
  %v1287 = vsub.f32 %v1178, %v1262
  %v1288 = vsub.f32 %v1180, %v1262
  %v1289 = vsub.f32 %v1184, %v1263
  %v1290 = vsub.f32 %v1186, %v1263
  %v1291 = vsub.f32 %v1190, %v1264
  %v1292 = vsub.f32 %v1192, %v1264
  %v1293 = vmul.f32 %v1265, %v1265
  %v1294 = vmul.f32 %v1266, %v1266
  %v1295 = vmul.f32 %v1267, %v1267
  %v1296 = vmul.f32 %v1268, %v1268
  %v1297 = vmul.f32 %v1269, %v1269
  %v1298 = vmul.f32 %v1270, %v1270
  %v1299 = vmul.f32 %v1271, %v1271
  %v1300 = vmul.f32 %v1272, %v1272
  %v1301 = vmul.f32 %v1273, %v1273
  %v1302 = vmul.f32 %v1274, %v1274
  %v1303 = vmul.f32 %v1275, %v1275
  %v1304 = vmul.f32 %v1276, %v1276
  %v1305 = vmul.f32 %v1277, %v1277
  %v1306 = vmul.f32 %v1278, %v1278
  %v1307 = vmul.f32 %v1279, %v1279
  %v1308 = vmul.f32 %v1280, %v1280
  %v1309 = vmul.f32 %v1281, %v1281
  %v1310 = vmul.f32 %v1282, %v1282
  %v1311 = vmul.f32 %v1283, %v1283
  %v1312 = vmul.f32 %v1284, %v1284
  %v1313 = vmul.f32 %v1285, %v1285
  %v1314 = vmul.f32 %v1286, %v1286
  %v1315 = vmul.f32 %v1287, %v1287
  %v1316 = vmul.f32 %v1288, %v1288
  %v1317 = vmul.f32 %v1289, %v1289
  %v1318 = vmul.f32 %v1290, %v1290
  %v1319 = vmul.f32 %v1291, %v1291
  %v1320 = vmul.f32 %v1292, %v1292
  %v1321 = vsel %vm1194, %v1294, 0.0
  %v1322 = vadd.f32 %v1293, %v1321
  %1323 = vadd.xlane.f32.xlu0 %v1322
  %v1324 = vpop.xlane.xlu0 %1323
  %v1325 = vsel %vm1194, %v1296, 0.0
  %v1326 = vadd.f32 %v1295, %v1325
  %1327 = vadd.xlane.f32.xlu0 %v1326
  %v1328 = vpop.xlane.xlu0 %1327
  %v1329 = vsel %vm1194, %v1298, 0.0
  %v1330 = vadd.f32 %v1297, %v1329
  %1331 = vadd.xlane.f32.xlu0 %v1330
  %v1332 = vpop.xlane.xlu0 %1331
  %v1333 = vsel %vm1194, %v1300, 0.0
  %v1334 = vadd.f32 %v1299, %v1333
  %1335 = vadd.xlane.f32.xlu0 %v1334
  %v1336 = vpop.xlane.xlu0 %1335
  %v1337 = vsel %vm1194, %v1302, 0.0
  %v1338 = vadd.f32 %v1301, %v1337
  %1339 = vadd.xlane.f32.xlu0 %v1338
  %v1340 = vpop.xlane.xlu0 %1339
  %v1341 = vsel %vm1194, %v1304, 0.0
  %v1342 = vadd.f32 %v1303, %v1341
  %1343 = vadd.xlane.f32.xlu0 %v1342
  %v1344 = vpop.xlane.xlu0 %1343
  %v1345 = vsel %vm1194, %v1306, 0.0
  %v1346 = vadd.f32 %v1305, %v1345
  %1347 = vadd.xlane.f32.xlu0 %v1346
  %v1348 = vpop.xlane.xlu0 %1347
  %v1349 = vsel %vm1194, %v1308, 0.0
  %v1350 = vadd.f32 %v1307, %v1349
  %1351 = vadd.xlane.f32.xlu0 %v1350
  %v1352 = vpop.xlane.xlu0 %1351
  %v1353 = vsel %vm1194, %v1310, 0.0
  %v1354 = vadd.f32 %v1309, %v1353
  %1355 = vadd.xlane.f32.xlu0 %v1354
  %v1356 = vpop.xlane.xlu0 %1355
  %v1357 = vsel %vm1194, %v1312, 0.0
  %v1358 = vadd.f32 %v1311, %v1357
  %1359 = vadd.xlane.f32.xlu0 %v1358
  %v1360 = vpop.xlane.xlu0 %1359
  %v1361 = vsel %vm1194, %v1314, 0.0
  %v1362 = vadd.f32 %v1313, %v1361
  %1363 = vadd.xlane.f32.xlu0 %v1362
  %v1364 = vpop.xlane.xlu0 %1363
  %v1365 = vsel %vm1194, %v1316, 0.0
  %v1366 = vadd.f32 %v1315, %v1365
  %1367 = vadd.xlane.f32.xlu0 %v1366
  %v1368 = vpop.xlane.xlu0 %1367
  %v1369 = vsel %vm1194, %v1318, 0.0
  %v1370 = vadd.f32 %v1317, %v1369
  %1371 = vadd.xlane.f32.xlu0 %v1370
  %v1372 = vpop.xlane.xlu0 %1371
  %v1373 = vsel %vm1194, %v1320, 0.0
  %v1374 = vadd.f32 %v1319, %v1373
  %1375 = vadd.xlane.f32.xlu0 %v1374
  %v1376 = vpop.xlane.xlu0 %1375
  %v1377 = vmul.f32 %v1324, 0.0051020407
  %v1378 = vmul.f32 %v1328, 0.0051020407
  %v1379 = vmul.f32 %v1332, 0.0051020407
  %v1380 = vmul.f32 %v1336, 0.0051020407
  %v1381 = vmul.f32 %v1340, 0.0051020407
  %v1382 = vmul.f32 %v1344, 0.0051020407
  %v1383 = vmul.f32 %v1348, 0.0051020407
  %v1384 = vmul.f32 %v1352, 0.0051020407
  %v1385 = vmul.f32 %v1356, 0.0051020407
  %v1386 = vmul.f32 %v1360, 0.0051020407
  %v1387 = vmul.f32 %v1364, 0.0051020407
  %v1388 = vmul.f32 %v1368, 0.0051020407
  %v1389 = vmul.f32 %v1372, 0.0051020407
  %v1390 = vmul.f32 %v1376, 0.0051020407
  %v1391 = vadd.f32 %v1377, 1e-05
  %v1392 = vadd.f32 %v1378, 1e-05
  %v1393 = vadd.f32 %v1379, 1e-05
  %v1394 = vadd.f32 %v1380, 1e-05
  %v1395 = vadd.f32 %v1381, 1e-05
  %v1396 = vadd.f32 %v1382, 1e-05
  %v1397 = vadd.f32 %v1383, 1e-05
  %v1398 = vadd.f32 %v1384, 1e-05
  %v1399 = vadd.f32 %v1385, 1e-05
  %v1400 = vadd.f32 %v1386, 1e-05
  %v1401 = vadd.f32 %v1387, 1e-05
  %v1402 = vadd.f32 %v1388, 1e-05
  %v1403 = vadd.f32 %v1389, 1e-05
  %v1404 = vadd.f32 %v1390, 1e-05
  %v1405 = vrsqrt.pop %v1391
  %v1406 = vrsqrt.pop %v1392
  %v1407 = vrsqrt.pop %v1393
  %v1408 = vrsqrt.pop %v1394
  %v1409 = vrsqrt.pop %v1395
  %v1410 = vrsqrt.pop %v1396
  %v1411 = vrsqrt.pop %v1397
  %v1412 = vrsqrt.pop %v1398
  %v1413 = vrsqrt.pop %v1399
  %v1414 = vrsqrt.pop %v1400
  %v1415 = vrsqrt.pop %v1401
  %v1416 = vrsqrt.pop %v1402
  %v1417 = vrsqrt.pop %v1403
  %v1418 = vrsqrt.pop %v1404
  %v1419 = vld [vmem:[%s5] sm:$0xff]
  %v1420 = vld [vmem:[%s5 + $0x8] sm:$0xff]
  %v1421 = vld [vmem:[%s5 + $0x10] sm:$0xff]
  %v1422 = vld [vmem:[%s5 + $0x18] sm:$0xff]
  %v1423 = vld [vmem:[%s5 + $0x20] sm:$0xff]
  %v1424 = vld [vmem:[%s5 + $0x28] sm:$0xff]
  %v1425 = vld [vmem:[%s5 + $0x30] sm:$0xff]
  %v1426 = vld [vmem:[%s5 + $0x38] sm:$0xff]
  %v1427 = vld [vmem:[%s5 + $0x40] sm:$0xff]
  %v1428 = vld [vmem:[%s5 + $0x48] sm:$0xff]
  %v1429 = vld [vmem:[%s5 + $0x50] sm:$0xff]
  %v1430 = vld [vmem:[%s5 + $0x58] sm:$0xff]
  %v1431 = vld [vmem:[%s5 + $0x60] sm:$0xff]
  %v1432 = vld [vmem:[%s5 + $0x68] sm:$0xff]
  %v1433 = vmul.f32 %v1405, %v1419
  %v1434 = vmul.f32 %v1406, %v1420
  %v1435 = vmul.f32 %v1407, %v1421
  %v1436 = vmul.f32 %v1408, %v1422
  %v1437 = vmul.f32 %v1409, %v1423
  %v1438 = vmul.f32 %v1410, %v1424
  %v1439 = vmul.f32 %v1411, %v1425
  %v1440 = vmul.f32 %v1412, %v1426
  %v1441 = vmul.f32 %v1413, %v1427
  %v1442 = vmul.f32 %v1414, %v1428
  %v1443 = vmul.f32 %v1415, %v1429
  %v1444 = vmul.f32 %v1416, %v1430
  %v1445 = vmul.f32 %v1417, %v1431
  %v1446 = vmul.f32 %v1418, %v1432
  %1448 = vset.pattern.permute.xlu0 0
  %1449 = vperm.xlu0 %1448, %v1433
  %v1450 = vpop.permute.xlu0 %1449
  %1453 = vset.pattern.permute.xlu0 0
  %1454 = vperm.xlu0 %1453, %v1434
  %v1455 = vpop.permute.xlu0 %1454
  %1458 = vset.pattern.permute.xlu0 0
  %1459 = vperm.xlu0 %1458, %v1435
  %v1460 = vpop.permute.xlu0 %1459
  %1463 = vset.pattern.permute.xlu0 0
  %1464 = vperm.xlu0 %1463, %v1436
  %v1465 = vpop.permute.xlu0 %1464
  %1468 = vset.pattern.permute.xlu0 0
  %1469 = vperm.xlu0 %1468, %v1437
  %v1470 = vpop.permute.xlu0 %1469
  %1473 = vset.pattern.permute.xlu0 0
  %1474 = vperm.xlu0 %1473, %v1438
  %v1475 = vpop.permute.xlu0 %1474
  %1478 = vset.pattern.permute.xlu0 0
  %1479 = vperm.xlu0 %1478, %v1439
  %v1480 = vpop.permute.xlu0 %1479
  %1483 = vset.pattern.permute.xlu0 0
  %1484 = vperm.xlu0 %1483, %v1440
  %v1485 = vpop.permute.xlu0 %1484
  %1488 = vset.pattern.permute.xlu0 0
  %1489 = vperm.xlu0 %1488, %v1441
  %v1490 = vpop.permute.xlu0 %1489
  %1493 = vset.pattern.permute.xlu0 0
  %1494 = vperm.xlu0 %1493, %v1442
  %v1495 = vpop.permute.xlu0 %1494
  %1498 = vset.pattern.permute.xlu0 0
  %1499 = vperm.xlu0 %1498, %v1443
  %v1500 = vpop.permute.xlu0 %1499
  %1503 = vset.pattern.permute.xlu0 0
  %1504 = vperm.xlu0 %1503, %v1444
  %v1505 = vpop.permute.xlu0 %1504
  %1508 = vset.pattern.permute.xlu0 0
  %1509 = vperm.xlu0 %1508, %v1445
  %v1510 = vpop.permute.xlu0 %1509
  %1513 = vset.pattern.permute.xlu0 0
  %1514 = vperm.xlu0 %1513, %v1446
  %v1515 = vpop.permute.xlu0 %1514
  %v1517 = vmul.f32 %v1265, %v1450
  %v1518 = vmul.f32 %v1266, %v1450
  %v1519 = vmul.f32 %v1267, %v1455
  %v1520 = vmul.f32 %v1268, %v1455
  %v1521 = vmul.f32 %v1269, %v1460
  %v1522 = vmul.f32 %v1270, %v1460
  %v1523 = vmul.f32 %v1271, %v1465
  %v1524 = vmul.f32 %v1272, %v1465
  %v1525 = vmul.f32 %v1273, %v1470
  %v1526 = vmul.f32 %v1274, %v1470
  %v1527 = vmul.f32 %v1275, %v1475
  %v1528 = vmul.f32 %v1276, %v1475
  %v1529 = vmul.f32 %v1277, %v1480
  %v1530 = vmul.f32 %v1278, %v1480
  %v1531 = vmul.f32 %v1279, %v1485
  %v1532 = vmul.f32 %v1280, %v1485
  %v1533 = vmul.f32 %v1281, %v1490
  %v1534 = vmul.f32 %v1282, %v1490
  %v1535 = vmul.f32 %v1283, %v1495
  %v1536 = vmul.f32 %v1284, %v1495
  %v1537 = vmul.f32 %v1285, %v1500
  %v1538 = vmul.f32 %v1286, %v1500
  %v1539 = vmul.f32 %v1287, %v1505
  %v1540 = vmul.f32 %v1288, %v1505
  %v1541 = vmul.f32 %v1289, %v1510
  %v1542 = vmul.f32 %v1290, %v1510
  %v1543 = vmul.f32 %v1291, %v1515
  %v1544 = vmul.f32 %v1292, %v1515
  %v1545 = vld [vmem:[%s6] sm:$0xff]
  %v1546 = vld [vmem:[%s6 + $0x8] sm:$0xff]
  %v1547 = vld [vmem:[%s6 + $0x10] sm:$0xff]
  %v1548 = vld [vmem:[%s6 + $0x18] sm:$0xff]
  %v1549 = vld [vmem:[%s6 + $0x20] sm:$0xff]
  %v1550 = vld [vmem:[%s6 + $0x28] sm:$0xff]
  %v1551 = vld [vmem:[%s6 + $0x30] sm:$0xff]
  %v1552 = vld [vmem:[%s6 + $0x38] sm:$0xff]
  %v1553 = vld [vmem:[%s6 + $0x40] sm:$0xff]
  %v1554 = vld [vmem:[%s6 + $0x48] sm:$0xff]
  %v1555 = vld [vmem:[%s6 + $0x50] sm:$0xff]
  %v1556 = vld [vmem:[%s6 + $0x58] sm:$0xff]
  %v1557 = vld [vmem:[%s6 + $0x60] sm:$0xff]
  %v1558 = vld [vmem:[%s6 + $0x68] sm:$0xff]
  %1560 = vset.pattern.permute.xlu0 0
  %1561 = vperm.xlu0 %1560, %v1545
  %v1562 = vpop.permute.xlu0 %1561
  %1565 = vset.pattern.permute.xlu0 0
  %1566 = vperm.xlu0 %1565, %v1546
  %v1567 = vpop.permute.xlu0 %1566
  %1570 = vset.pattern.permute.xlu0 0
  %1571 = vperm.xlu0 %1570, %v1547
  %v1572 = vpop.permute.xlu0 %1571
  %1575 = vset.pattern.permute.xlu0 0
  %1576 = vperm.xlu0 %1575, %v1548
  %v1577 = vpop.permute.xlu0 %1576
  %1580 = vset.pattern.permute.xlu0 0
  %1581 = vperm.xlu0 %1580, %v1549
  %v1582 = vpop.permute.xlu0 %1581
  %1585 = vset.pattern.permute.xlu0 0
  %1586 = vperm.xlu0 %1585, %v1550
  %v1587 = vpop.permute.xlu0 %1586
  %1590 = vset.pattern.permute.xlu0 0
  %1591 = vperm.xlu0 %1590, %v1551
  %v1592 = vpop.permute.xlu0 %1591
  %1595 = vset.pattern.permute.xlu0 0
  %1596 = vperm.xlu0 %1595, %v1552
  %v1597 = vpop.permute.xlu0 %1596
  %1600 = vset.pattern.permute.xlu0 0
  %1601 = vperm.xlu0 %1600, %v1553
  %v1602 = vpop.permute.xlu0 %1601
  %1605 = vset.pattern.permute.xlu0 0
  %1606 = vperm.xlu0 %1605, %v1554
  %v1607 = vpop.permute.xlu0 %1606
  %1610 = vset.pattern.permute.xlu0 0
  %1611 = vperm.xlu0 %1610, %v1555
  %v1612 = vpop.permute.xlu0 %1611
  %1615 = vset.pattern.permute.xlu0 0
  %1616 = vperm.xlu0 %1615, %v1556
  %v1617 = vpop.permute.xlu0 %1616
  %1620 = vset.pattern.permute.xlu0 0
  %1621 = vperm.xlu0 %1620, %v1557
  %v1622 = vpop.permute.xlu0 %1621
  %1625 = vset.pattern.permute.xlu0 0
  %1626 = vperm.xlu0 %1625, %v1558
  %v1627 = vpop.permute.xlu0 %1626
  %v1629 = vadd.f32 %v1517, %v1562
  %v1630 = vadd.f32 %v1518, %v1562
  %v1631 = vadd.f32 %v1519, %v1567
  %v1632 = vadd.f32 %v1520, %v1567
  %v1633 = vadd.f32 %v1521, %v1572
  %v1634 = vadd.f32 %v1522, %v1572
  %v1635 = vadd.f32 %v1523, %v1577
  %v1636 = vadd.f32 %v1524, %v1577
  %v1637 = vadd.f32 %v1525, %v1582
  %v1638 = vadd.f32 %v1526, %v1582
  %v1639 = vadd.f32 %v1527, %v1587
  %v1640 = vadd.f32 %v1528, %v1587
  %v1641 = vadd.f32 %v1529, %v1592
  %v1642 = vadd.f32 %v1530, %v1592
  %v1643 = vadd.f32 %v1531, %v1597
  %v1644 = vadd.f32 %v1532, %v1597
  %v1645 = vadd.f32 %v1533, %v1602
  %v1646 = vadd.f32 %v1534, %v1602
  %v1647 = vadd.f32 %v1535, %v1607
  %v1648 = vadd.f32 %v1536, %v1607
  %v1649 = vadd.f32 %v1537, %v1612
  %v1650 = vadd.f32 %v1538, %v1612
  %v1651 = vadd.f32 %v1539, %v1617
  %v1652 = vadd.f32 %v1540, %v1617
  %v1653 = vadd.f32 %v1541, %v1622
  %v1654 = vadd.f32 %v1542, %v1622
  %v1655 = vadd.f32 %v1543, %v1627
  %v1656 = vadd.f32 %v1544, %v1627
  %1657 = vst [vmem:[%s7] sm:$0xff] %v1629
  %1658 = vst.msk [vmem:[%s7 + $0x8] sm:$0xff] %vm1194, %v1630
  %1659 = vst [vmem:[%s7 + $0x10] sm:$0xff] %v1631
  %1660 = vst.msk [vmem:[%s7 + $0x18] sm:$0xff] %vm1194, %v1632
  %1661 = vst [vmem:[%s7 + $0x20] sm:$0xff] %v1633
  %1662 = vst.msk [vmem:[%s7 + $0x28] sm:$0xff] %vm1194, %v1634
  %1663 = vst [vmem:[%s7 + $0x30] sm:$0xff] %v1635
  %1664 = vst.msk [vmem:[%s7 + $0x38] sm:$0xff] %vm1194, %v1636
  %1665 = vst [vmem:[%s7 + $0x40] sm:$0xff] %v1637
  %1666 = vst.msk [vmem:[%s7 + $0x48] sm:$0xff] %vm1194, %v1638
  %1667 = vst [vmem:[%s7 + $0x50] sm:$0xff] %v1639
  %1668 = vst.msk [vmem:[%s7 + $0x58] sm:$0xff] %vm1194, %v1640
  %1669 = vst [vmem:[%s7 + $0x60] sm:$0xff] %v1641
  %1670 = vst.msk [vmem:[%s7 + $0x68] sm:$0xff] %vm1194, %v1642
  %1671 = vst [vmem:[%s7 + $0x70] sm:$0xff] %v1643
  %1672 = vst.msk [vmem:[%s7 + $0x78] sm:$0xff] %vm1194, %v1644
  %1673 = vst [vmem:[%s7 + $0x80] sm:$0xff] %v1645
  %1674 = vst.msk [vmem:[%s7 + $0x88] sm:$0xff] %vm1194, %v1646
  %1675 = vst [vmem:[%s7 + $0x90] sm:$0xff] %v1647
  %1676 = vst.msk [vmem:[%s7 + $0x98] sm:$0xff] %vm1194, %v1648
  %1677 = vst [vmem:[%s7 + $0xa0] sm:$0xff] %v1649
  %1678 = vst.msk [vmem:[%s7 + $0xa8] sm:$0xff] %vm1194, %v1650
  %1679 = vst [vmem:[%s7 + $0xb0] sm:$0xff] %v1651
  %1680 = vst.msk [vmem:[%s7 + $0xb8] sm:$0xff] %vm1194, %v1652
  %1681 = vst [vmem:[%s7 + $0xc0] sm:$0xff] %v1653
  %1682 = vst.msk [vmem:[%s7 + $0xc8] sm:$0xff] %vm1194, %v1654
  %1683 = vst [vmem:[%s7 + $0xd0] sm:$0xff] %v1655
  %1684 = vst.msk [vmem:[%s7 + $0xd8] sm:$0xff] %vm1194, %v1656
  // Predicated region
  $region30: #{forward.1} parent=0 // pred_check
    _
  $region31: #{forward.1} parent=0 // pred_check_branch
    %1686 = sbr.rel (0) target = $region33
  $region32: #{forward.1} parent=0 // pred_region
    _
  $region33: #{forward.1} parent=0 // pred_fallthru
    _
  // Predicated region
  $region34: #{forward.1} parent=0 // pred_check
    _
  $region35: #{forward.1} parent=0 // pred_check_branch
    %1688 = sbr.rel (0) target = $region37
  $region36: #{forward.1} parent=0 // pred_region
    _
  $region37: #{forward.1} parent=0 // pred_fallthru
    _

</llo_original>
